<compile_context>
chip_gen: v6e
topology: v6e:2x2x1
jax: 0.10.0
libtpu: 0.0.40
codegen_flags: <defaults>
</compile_context>

<pallas_src>
import math
import functools

import jax
import jax.numpy as jnp
from jax.experimental import pallas as pl
from jax.experimental.pallas import tpu as pltpu

# ----- model config (small, stands in for config.model.gpt2) -----
D_MODEL = 32          # hidden_size
N_HEADS = 4           # heads
N_LAYERS = 2          # layers
HEAD_DIM = D_MODEL // N_HEADS
FFN = 4 * D_MODEL     # dim_feedforward
LN_EPS = 1e-5
NEG_INF = -1e30       # finite "-inf": avoids NaN for fully-masked rows


def _layer_norm(y, g, b):
    mean = jnp.mean(y, axis=-1, keepdims=True)
    var = jnp.mean((y - mean) ** 2, axis=-1, keepdims=True)
    return (y - mean) * jax.lax.rsqrt(var + LN_EPS) * g + b


# ---------------- single fused whole-forward kernel ----------------

def _decoder_kernel(x_ref, pad_ref,
                    wqkv_ref, bqkv_ref, wo_ref, bo_ref, ln1g_ref, ln1b_ref,
                    w1_ref, b1_ref, w2_ref, b2_ref, ln2g_ref, ln2b_ref,
                    o_ref, *, n_layers, n_heads, head_dim):
    """One batch element through ALL layers: attn (+add&LN) then FFN (+add&LN)."""
    x = x_ref[0]                                     # (S, D) f32
    S, D = x.shape

    # additive mask: causal + key-padding bias, built ONCE per grid step
    q_pos = jax.lax.broadcasted_iota(jnp.int32, (S, S), 0)
    k_pos = jax.lax.broadcasted_iota(jnp.int32, (S, S), 1)
    bias = jnp.where(k_pos > q_pos, NEG_INF, 0.0).astype(jnp.float32) + pad_ref[0]
    bias = bias[None]                                # (1, S, S) broadcast over heads

    for l in range(n_layers):                        # static layer unroll, VMEM-resident
        # ---- self-attention block (1/sqrt(Dh) pre-folded into Wq/bq) ----
        qkv = jnp.dot(x.astype(jnp.bfloat16), wqkv_ref[l],
                      preferred_element_type=jnp.float32) + bqkv_ref[l]   # (S, 3D)
        q = qkv[:, :D]
        k = qkv[:, D:2 * D]
        v = qkv[:, 2 * D:]

        # (H, S, Dh) head-batched operands -> ONE batched contraction per dot
        q3 = jnp.stack([q[:, h * head_dim:(h + 1) * head_dim] for h in range(n_heads)])
        k3 = jnp.stack([k[:, h * head_dim:(h + 1) * head_dim] for h in range(n_heads)])
        v3 = jnp.stack([v[:, h * head_dim:(h + 1) * head_dim] for h in range(n_heads)])

        s = jnp.einsum('hqd,hkd->hqk',
                       q3.astype(jnp.bfloat16), k3.astype(jnp.bfloat16),
                       preferred_element_type=jnp.float32) + bias         # (H, S, S)
        s = s - jnp.max(s, axis=-1, keepdims=True)
        p = jnp.exp(s)                               # f32 softmax on VPU/EUP
        p = p * pl.reciprocal(jnp.sum(p, axis=-1, keepdims=True), approx=True)
        ctx3 = jnp.einsum('hqk,hkd->hqd',
                          p.astype(jnp.bfloat16), v3.astype(jnp.bfloat16),
                          preferred_element_type=jnp.float32)             # (H, S, Dh)
        ctx = jnp.concatenate([ctx3[h] for h in range(n_heads)], axis=-1)  # (S, D)

        attn = jnp.dot(ctx.astype(jnp.bfloat16), wo_ref[l],
                       preferred_element_type=jnp.float32) + bo_ref[l]
        # TODO(synk): dropout layers (p=0.1) omitted -> eval/inference semantics.
        x = _layer_norm(x + attn, ln1g_ref[l], ln1b_ref[l])               # post-norm 1

        # ---- FFN block: linear1 -> exact GELU -> linear2 -> add & LN ----
        h = jnp.dot(x.astype(jnp.bfloat16), w1_ref[l],
                    preferred_element_type=jnp.float32) + b1_ref[l]       # (S, FFN)
        h = 0.5 * h * (1.0 + jax.lax.erf(h * (1.0 / math.sqrt(2.0))))     # exact GELU
        y = jnp.dot(h.astype(jnp.bfloat16), w2_ref[l],
                    preferred_element_type=jnp.float32) + b2_ref[l]
        x = _layer_norm(x + y, ln2g_ref[l], ln2b_ref[l])                  # post-norm 2

    o_ref[0] = x


# ---------------- pallas_call wrapper ----------------

def _rep_spec(a):
    """Full-array block, same block for every grid step (stays VMEM-resident)."""
    nd = a.ndim
    return pl.BlockSpec(a.shape, lambda b, _nd=nd: (0,) * _nd)


@jax.jit
def decoder_only_forward(input_ids, padding_mask, params):
    """input_ids: (B, S, D) float embeddings; padding_mask: (B, S) bool, True = pad."""
    B, S, D = input_ids.shape
    L = params['wqkv'].shape[0]

    # tiny (B,1,S) additive key-padding bias; causal part is built inside the kernel
    pad_bias = jnp.where(padding_mask[:, None, :], NEG_INF, 0.0).astype(jnp.float32)

    kern = functools.partial(_decoder_kernel, n_layers=L,
                             n_heads=N_HEADS, head_dim=HEAD_DIM)

    weight_args = (params['wqkv'], params['bqkv'], params['wo'], params['bo'],
                   params['ln1_g'], params['ln1_b'],
                   params['w1'], params['b1'], params['w2'], params['b2'],
                   params['ln2_g'], params['ln2_b'])

    return pl.pallas_call(
        kern,
        out_shape=jax.ShapeDtypeStruct((B, S, D), jnp.float32),
        grid=(B,),
        in_specs=[
            pl.BlockSpec((1, S, D), lambda b: (b, 0, 0)),       # x (per batch element)
            pl.BlockSpec((1, 1, S), lambda b: (b, 0, 0)),       # pad bias (additive)
        ] + [_rep_spec(w) for w in weight_args],                # stacked (L, ...) weights
        out_specs=pl.BlockSpec((1, S, D), lambda b: (b, 0, 0)),
        compiler_params=pltpu.CompilerParams(
            dimension_semantics=("parallel",)),                 # 2 TCs on v7x
    )(input_ids, pad_bias, *weight_args)


# ---------------- params (stacked over layers) ----------------

def init_params(key, n_layers):
    ks = jax.random.split(key, 4)
    s = 0.02
    scale = 1.0 / math.sqrt(HEAD_DIM)

    wqkv = jax.random.normal(ks[0], (n_layers, D_MODEL, 3 * D_MODEL), jnp.float32) * s
    bqkv = jnp.zeros((n_layers, 1, 3 * D_MODEL), jnp.float32)
    # fold 1/sqrt(head_dim) into the Q columns (host-side, free at runtime)
    wqkv = wqkv.at[:, :, :D_MODEL].multiply(scale)
    bqkv = bqkv.at[:, :, :D_MODEL].multiply(scale)

    return dict(
        # weights stored bf16 (MXU-native), biases / LN params f32
        wqkv=wqkv.astype(jnp.bfloat16),
        bqkv=bqkv,
        wo=(jax.random.normal(ks[1], (n_layers, D_MODEL, D_MODEL), jnp.float32) * s
            ).astype(jnp.bfloat16),
        bo=jnp.zeros((n_layers, 1, D_MODEL), jnp.float32),
        ln1_g=jnp.ones((n_layers, 1, D_MODEL), jnp.float32),
        ln1_b=jnp.zeros((n_layers, 1, D_MODEL), jnp.float32),
        w1=(jax.random.normal(ks[2], (n_layers, D_MODEL, FFN), jnp.float32) * s
            ).astype(jnp.bfloat16),
        b1=jnp.zeros((n_layers, 1, FFN), jnp.float32),
        w2=(jax.random.normal(ks[3], (n_layers, FFN, D_MODEL), jnp.float32) * s
            ).astype(jnp.bfloat16),
        b2=jnp.zeros((n_layers, 1, D_MODEL), jnp.float32),
        ln2_g=jnp.ones((n_layers, 1, D_MODEL), jnp.float32),
        ln2_b=jnp.zeros((n_layers, 1, D_MODEL), jnp.float32),
    )


if __name__ == "__main__":
    key = jax.random.PRNGKey(0)
    kx, kp = jax.random.split(key)

    B, S = 2, 8
    x = jax.random.normal(kx, (B, S, D_MODEL), jnp.float32)
    # one padded position (last token of batch 1); rest unpadded
    padding_mask = jnp.zeros((B, S), jnp.bool_).at[1, S - 1].set(True)

    params = init_params(kp, N_LAYERS)

    out = decoder_only_forward(x, padding_mask, params)
    out = jax.block_until_ready(out)

    assert out.shape == (B, S, D_MODEL)
    assert bool(jnp.all(jnp.isfinite(out)))
    print("KERNEL_OK")
</pallas_src>

<mosaic_0001>
module attributes {stable_mosaic.version = 11 : i64} {
  func.func @_decoder_kernel(%arg0: i32, %arg1: memref<1x8x32xf32, #tpu.memory_space<vmem>>, %arg2: memref<1x1x8xf32, #tpu.memory_space<vmem>>, %arg3: memref<2x32x96xbf16, #tpu.memory_space<vmem>>, %arg4: memref<2x1x96xf32, #tpu.memory_space<vmem>>, %arg5: memref<2x32x32xbf16, #tpu.memory_space<vmem>>, %arg6: memref<2x1x32xf32, #tpu.memory_space<vmem>>, %arg7: memref<2x1x32xf32, #tpu.memory_space<vmem>>, %arg8: memref<2x1x32xf32, #tpu.memory_space<vmem>>, %arg9: memref<2x32x128xbf16, #tpu.memory_space<vmem>>, %arg10: memref<2x1x128xf32, #tpu.memory_space<vmem>>, %arg11: memref<2x128x32xbf16, #tpu.memory_space<vmem>>, %arg12: memref<2x1x32xf32, #tpu.memory_space<vmem>>, %arg13: memref<2x1x32xf32, #tpu.memory_space<vmem>>, %arg14: memref<2x1x32xf32, #tpu.memory_space<vmem>>, %arg15: memref<1x8x32xf32, #tpu.memory_space<vmem>>) attributes {dimension_semantics = [#tpu.dimension_semantics<parallel>], iteration_bounds = array<i64: 2>, scalar_prefetch = 0 : i64, scratch_operands = 0 : i64, tpu.core_type = #tpu.core_type<tc>, window_params = [{transform_indices = @transform_0, window_bounds = array<i64: 1, 8, 32>}, {transform_indices = @transform_1, window_bounds = array<i64: 1, 1, 8>}, {pipeline_mode = #tpu.pipeline_mode<synchronous>, transform_indices = @transform_2, window_bounds = array<i64: 2, 32, 96>}, {pipeline_mode = #tpu.pipeline_mode<synchronous>, transform_indices = @transform_3, window_bounds = array<i64: 2, 1, 96>}, {pipeline_mode = #tpu.pipeline_mode<synchronous>, transform_indices = @transform_4, window_bounds = array<i64: 2, 32, 32>}, {pipeline_mode = #tpu.pipeline_mode<synchronous>, transform_indices = @transform_5, window_bounds = array<i64: 2, 1, 32>}, {pipeline_mode = #tpu.pipeline_mode<synchronous>, transform_indices = @transform_6, window_bounds = array<i64: 2, 1, 32>}, {pipeline_mode = #tpu.pipeline_mode<synchronous>, transform_indices = @transform_7, window_bounds = array<i64: 2, 1, 32>}, {pipeline_mode = #tpu.pipeline_mode<synchronous>, transform_indices = @transform_8, window_bounds = array<i64: 2, 32, 128>}, {pipeline_mode = #tpu.pipeline_mode<synchronous>, transform_indices = @transform_9, window_bounds = array<i64: 2, 1, 128>}, {pipeline_mode = #tpu.pipeline_mode<synchronous>, transform_indices = @transform_10, window_bounds = array<i64: 2, 128, 32>}, {pipeline_mode = #tpu.pipeline_mode<synchronous>, transform_indices = @transform_11, window_bounds = array<i64: 2, 1, 32>}, {pipeline_mode = #tpu.pipeline_mode<synchronous>, transform_indices = @transform_12, window_bounds = array<i64: 2, 1, 32>}, {pipeline_mode = #tpu.pipeline_mode<synchronous>, transform_indices = @transform_13, window_bounds = array<i64: 2, 1, 32>}, {transform_indices = @transform_14, window_bounds = array<i64: 1, 8, 32>}]} {
    %c0 = arith.constant 0 : index
    %c0_0 = arith.constant 0 : index
    %c0_1 = arith.constant 0 : index
    %0 = vector.load %arg1[%c0, %c0_0, %c0_1] : memref<1x8x32xf32, #tpu.memory_space<vmem>>, vector<1x8x32xf32>
    %1 = vector.shape_cast %0 : vector<1x8x32xf32> to vector<8x32xf32>
    %2 = tpu.iota {dimensions = array<i32: 0>} : vector<8x8xi32>
    %3 = tpu.iota {dimensions = array<i32: 1>} : vector<8x8xi32>
    %4 = arith.cmpi sgt, %3, %2 : vector<8x8xi32>
    %cst = arith.constant -1.000000e+30 : f32
    %cst_2 = arith.constant 0.000000e+00 : f32
    %5 = vector.broadcast %cst : f32 to vector<8x8xf32>
    %6 = vector.broadcast %cst_2 : f32 to vector<8x8xf32>
    %7 = arith.select %4, %5, %6 : vector<8x8xi1>, vector<8x8xf32>
    %c0_3 = arith.constant 0 : index
    %c0_4 = arith.constant 0 : index
    %c0_5 = arith.constant 0 : index
    %8 = vector.load %arg2[%c0_3, %c0_4, %c0_5] : memref<1x1x8xf32, #tpu.memory_space<vmem>>, vector<1x1x8xf32>
    %9 = vector.shape_cast %8 : vector<1x1x8xf32> to vector<1x8xf32>
    %10 = vector.broadcast %9 : vector<1x8xf32> to vector<8x8xf32>
    %11 = arith.addf %7, %10 : vector<8x8xf32>
    %12 = vector.shape_cast %11 : vector<8x8xf32> to vector<1x8x8xf32>
    %13 = arith.truncf %1 : vector<8x32xf32> to vector<8x32xbf16>
    %c0_6 = arith.constant 0 : index
    %c0_7 = arith.constant 0 : index
    %c0_8 = arith.constant 0 : index
    %14 = vector.load %arg3[%c0_6, %c0_7, %c0_8] : memref<2x32x96xbf16, #tpu.memory_space<vmem>>, vector<1x32x96xbf16>
    %15 = vector.shape_cast %14 : vector<1x32x96xbf16> to vector<32x96xbf16>
    %cst_9 = arith.constant dense<0.000000e+00> : vector<8x96xf32>
    %16 = tpu.matmul %13, %15, %cst_9 {dimension_numbers = #tpu.dot_dimension_numbers<[1], [0], [0], [1], [0, 0, 1, 1], [], []>} : vector<8x32xbf16>, vector<32x96xbf16>, vector<8x96xf32> -> vector<8x96xf32>
    %c0_10 = arith.constant 0 : index
    %c0_11 = arith.constant 0 : index
    %c0_12 = arith.constant 0 : index
    %17 = vector.load %arg4[%c0_10, %c0_11, %c0_12] : memref<2x1x96xf32, #tpu.memory_space<vmem>>, vector<1x1x96xf32>
    %18 = vector.shape_cast %17 : vector<1x1x96xf32> to vector<1x96xf32>
    %19 = vector.broadcast %18 : vector<1x96xf32> to vector<8x96xf32>
    %20 = arith.addf %16, %19 : vector<8x96xf32>
    %21 = vector.extract_strided_slice %20 {offsets = [0, 0], sizes = [8, 32], strides = [1, 1]} : vector<8x96xf32> to vector<8x32xf32>
    %22 = vector.extract_strided_slice %20 {offsets = [0, 32], sizes = [8, 32], strides = [1, 1]} : vector<8x96xf32> to vector<8x32xf32>
    %23 = vector.extract_strided_slice %20 {offsets = [0, 64], sizes = [8, 32], strides = [1, 1]} : vector<8x96xf32> to vector<8x32xf32>
    %24 = vector.extract_strided_slice %21 {offsets = [0, 0], sizes = [8, 8], strides = [1, 1]} : vector<8x32xf32> to vector<8x8xf32>
    %25 = vector.extract_strided_slice %21 {offsets = [0, 8], sizes = [8, 8], strides = [1, 1]} : vector<8x32xf32> to vector<8x8xf32>
    %26 = vector.extract_strided_slice %21 {offsets = [0, 16], sizes = [8, 8], strides = [1, 1]} : vector<8x32xf32> to vector<8x8xf32>
    %27 = vector.extract_strided_slice %21 {offsets = [0, 24], sizes = [8, 8], strides = [1, 1]} : vector<8x32xf32> to vector<8x8xf32>
    %28 = vector.shape_cast %24 : vector<8x8xf32> to vector<1x8x8xf32>
    %29 = vector.shape_cast %25 : vector<8x8xf32> to vector<1x8x8xf32>
    %30 = vector.shape_cast %26 : vector<8x8xf32> to vector<1x8x8xf32>
    %31 = vector.shape_cast %27 : vector<8x8xf32> to vector<1x8x8xf32>
    %32 = tpu.concatenate %28, %29, %30, %31 in 0 : vector<1x8x8xf32>, vector<1x8x8xf32>, vector<1x8x8xf32>, vector<1x8x8xf32> -> vector<4x8x8xf32>
    %33 = vector.extract_strided_slice %22 {offsets = [0, 0], sizes = [8, 8], strides = [1, 1]} : vector<8x32xf32> to vector<8x8xf32>
    %34 = vector.extract_strided_slice %22 {offsets = [0, 8], sizes = [8, 8], strides = [1, 1]} : vector<8x32xf32> to vector<8x8xf32>
    %35 = vector.extract_strided_slice %22 {offsets = [0, 16], sizes = [8, 8], strides = [1, 1]} : vector<8x32xf32> to vector<8x8xf32>
    %36 = vector.extract_strided_slice %22 {offsets = [0, 24], sizes = [8, 8], strides = [1, 1]} : vector<8x32xf32> to vector<8x8xf32>
    %37 = vector.shape_cast %33 : vector<8x8xf32> to vector<1x8x8xf32>
    %38 = vector.shape_cast %34 : vector<8x8xf32> to vector<1x8x8xf32>
    %39 = vector.shape_cast %35 : vector<8x8xf32> to vector<1x8x8xf32>
    %40 = vector.shape_cast %36 : vector<8x8xf32> to vector<1x8x8xf32>
    %41 = tpu.concatenate %37, %38, %39, %40 in 0 : vector<1x8x8xf32>, vector<1x8x8xf32>, vector<1x8x8xf32>, vector<1x8x8xf32> -> vector<4x8x8xf32>
    %42 = vector.extract_strided_slice %23 {offsets = [0, 0], sizes = [8, 8], strides = [1, 1]} : vector<8x32xf32> to vector<8x8xf32>
    %43 = vector.extract_strided_slice %23 {offsets = [0, 8], sizes = [8, 8], strides = [1, 1]} : vector<8x32xf32> to vector<8x8xf32>
    %44 = vector.extract_strided_slice %23 {offsets = [0, 16], sizes = [8, 8], strides = [1, 1]} : vector<8x32xf32> to vector<8x8xf32>
    %45 = vector.extract_strided_slice %23 {offsets = [0, 24], sizes = [8, 8], strides = [1, 1]} : vector<8x32xf32> to vector<8x8xf32>
    %46 = vector.shape_cast %42 : vector<8x8xf32> to vector<1x8x8xf32>
    %47 = vector.shape_cast %43 : vector<8x8xf32> to vector<1x8x8xf32>
    %48 = vector.shape_cast %44 : vector<8x8xf32> to vector<1x8x8xf32>
    %49 = vector.shape_cast %45 : vector<8x8xf32> to vector<1x8x8xf32>
    %50 = tpu.concatenate %46, %47, %48, %49 in 0 : vector<1x8x8xf32>, vector<1x8x8xf32>, vector<1x8x8xf32>, vector<1x8x8xf32> -> vector<4x8x8xf32>
    %51 = arith.truncf %32 : vector<4x8x8xf32> to vector<4x8x8xbf16>
    %52 = arith.truncf %41 : vector<4x8x8xf32> to vector<4x8x8xbf16>
    "tpu.trace_start"() <{level = 10 : i32, message = "hqd,hkd->hqk"}> : () -> ()
    %cst_13 = arith.constant dense<0.000000e+00> : vector<4x8x8xf32>
    %53 = tpu.matmul %51, %52, %cst_13 {dimension_numbers = #tpu.dot_dimension_numbers<[2], [2], [1], [1], [0, 0, 0, 1, 1, 1], [0], [0]>} : vector<4x8x8xbf16>, vector<4x8x8xbf16>, vector<4x8x8xf32> -> vector<4x8x8xf32>
    "tpu.trace_stop"() : () -> ()
    %54 = vector.broadcast %12 : vector<1x8x8xf32> to vector<4x8x8xf32>
    %55 = arith.addf %53, %54 : vector<4x8x8xf32>
    %cst_14 = arith.constant dense<0xFF800000> : vector<4x8xf32>
    %56 = vector.multi_reduction <maximumf>, %55, %cst_14 [2] : vector<4x8x8xf32> to vector<4x8xf32>
    %57 = vector.shape_cast %56 : vector<4x8xf32> to vector<4x8x1xf32>
    %58 = vector.broadcast %57 : vector<4x8x1xf32> to vector<4x8x8xf32>
    %59 = arith.subf %55, %58 : vector<4x8x8xf32>
    %60 = math.exp %59 : vector<4x8x8xf32>
    %cst_15 = arith.constant dense<0.000000e+00> : vector<4x8xf32>
    %61 = vector.multi_reduction <add>, %60, %cst_15 [2] : vector<4x8x8xf32> to vector<4x8xf32>
    %62 = vector.shape_cast %61 : vector<4x8xf32> to vector<4x8x1xf32>
    %63 = tpu.reciprocal %62 {approx = true} : vector<4x8x1xf32> -> vector<4x8x1xf32>
    %64 = vector.broadcast %63 : vector<4x8x1xf32> to vector<4x8x8xf32>
    %65 = arith.mulf %60, %64 : vector<4x8x8xf32>
    %66 = arith.truncf %65 : vector<4x8x8xf32> to vector<4x8x8xbf16>
    %67 = arith.truncf %50 : vector<4x8x8xf32> to vector<4x8x8xbf16>
    "tpu.trace_start"() <{level = 10 : i32, message = "hqk,hkd->hqd"}> : () -> ()
    %cst_16 = arith.constant dense<0.000000e+00> : vector<4x8x8xf32>
    %68 = tpu.matmul %66, %67, %cst_16 {dimension_numbers = #tpu.dot_dimension_numbers<[2], [1], [1], [2], [0, 0, 0, 1, 1, 2], [0], [0]>} : vector<4x8x8xbf16>, vector<4x8x8xbf16>, vector<4x8x8xf32> -> vector<4x8x8xf32>
    "tpu.trace_stop"() : () -> ()
    %69 = vector.extract_strided_slice %68 {offsets = [0, 0, 0], sizes = [1, 8, 8], strides = [1, 1, 1]} : vector<4x8x8xf32> to vector<1x8x8xf32>
    %70 = vector.shape_cast %69 : vector<1x8x8xf32> to vector<8x8xf32>
    %71 = vector.extract_strided_slice %68 {offsets = [1, 0, 0], sizes = [1, 8, 8], strides = [1, 1, 1]} : vector<4x8x8xf32> to vector<1x8x8xf32>
    %72 = vector.shape_cast %71 : vector<1x8x8xf32> to vector<8x8xf32>
    %73 = vector.extract_strided_slice %68 {offsets = [2, 0, 0], sizes = [1, 8, 8], strides = [1, 1, 1]} : vector<4x8x8xf32> to vector<1x8x8xf32>
    %74 = vector.shape_cast %73 : vector<1x8x8xf32> to vector<8x8xf32>
    %75 = vector.extract_strided_slice %68 {offsets = [3, 0, 0], sizes = [1, 8, 8], strides = [1, 1, 1]} : vector<4x8x8xf32> to vector<1x8x8xf32>
    %76 = vector.shape_cast %75 : vector<1x8x8xf32> to vector<8x8xf32>
    %77 = tpu.concatenate %70, %72, %74, %76 in 1 : vector<8x8xf32>, vector<8x8xf32>, vector<8x8xf32>, vector<8x8xf32> -> vector<8x32xf32>
    %78 = arith.truncf %77 : vector<8x32xf32> to vector<8x32xbf16>
    %c0_17 = arith.constant 0 : index
    %c0_18 = arith.constant 0 : index
    %c0_19 = arith.constant 0 : index
    %79 = vector.load %arg5[%c0_17, %c0_18, %c0_19] : memref<2x32x32xbf16, #tpu.memory_space<vmem>>, vector<1x32x32xbf16>
    %80 = vector.shape_cast %79 : vector<1x32x32xbf16> to vector<32x32xbf16>
    %cst_20 = arith.constant dense<0.000000e+00> : vector<8x32xf32>
    %81 = tpu.matmul %78, %80, %cst_20 {dimension_numbers = #tpu.dot_dimension_numbers<[1], [0], [0], [1], [0, 0, 1, 1], [], []>} : vector<8x32xbf16>, vector<32x32xbf16>, vector<8x32xf32> -> vector<8x32xf32>
    %c0_21 = arith.constant 0 : index
    %c0_22 = arith.constant 0 : index
    %c0_23 = arith.constant 0 : index
    %82 = vector.load %arg6[%c0_21, %c0_22, %c0_23] : memref<2x1x32xf32, #tpu.memory_space<vmem>>, vector<1x1x32xf32>
    %83 = vector.shape_cast %82 : vector<1x1x32xf32> to vector<1x32xf32>
    %84 = vector.broadcast %83 : vector<1x32xf32> to vector<8x32xf32>
    %85 = arith.addf %81, %84 : vector<8x32xf32>
    %86 = arith.addf %1, %85 : vector<8x32xf32>
    %c0_24 = arith.constant 0 : index
    %c0_25 = arith.constant 0 : index
    %c0_26 = arith.constant 0 : index
    %87 = vector.load %arg7[%c0_24, %c0_25, %c0_26] : memref<2x1x32xf32, #tpu.memory_space<vmem>>, vector<1x1x32xf32>
    %88 = vector.shape_cast %87 : vector<1x1x32xf32> to vector<1x32xf32>
    %c0_27 = arith.constant 0 : index
    %c0_28 = arith.constant 0 : index
    %c0_29 = arith.constant 0 : index
    %89 = vector.load %arg8[%c0_27, %c0_28, %c0_29] : memref<2x1x32xf32, #tpu.memory_space<vmem>>, vector<1x1x32xf32>
    %90 = vector.shape_cast %89 : vector<1x1x32xf32> to vector<1x32xf32>
    %cst_30 = arith.constant dense<0.000000e+00> : vector<8xf32>
    %91 = vector.multi_reduction <add>, %86, %cst_30 [1] : vector<8x32xf32> to vector<8xf32>
    %92 = vector.shape_cast %91 : vector<8xf32> to vector<8x1xf32>
    %cst_31 = arith.constant 3.200000e+01 : f32
    %93 = vector.broadcast %cst_31 : f32 to vector<8x1xf32>
    %94 = arith.divf %92, %93 : vector<8x1xf32>
    %95 = vector.broadcast %94 : vector<8x1xf32> to vector<8x32xf32>
    %96 = arith.subf %86, %95 : vector<8x32xf32>
    %97 = arith.mulf %96, %96 : vector<8x32xf32>
    %cst_32 = arith.constant dense<0.000000e+00> : vector<8xf32>
    %98 = vector.multi_reduction <add>, %97, %cst_32 [1] : vector<8x32xf32> to vector<8xf32>
    %99 = vector.shape_cast %98 : vector<8xf32> to vector<8x1xf32>
    %cst_33 = arith.constant 3.200000e+01 : f32
    %100 = vector.broadcast %cst_33 : f32 to vector<8x1xf32>
    %101 = arith.divf %99, %100 : vector<8x1xf32>
    %102 = vector.broadcast %94 : vector<8x1xf32> to vector<8x32xf32>
    %103 = arith.subf %86, %102 : vector<8x32xf32>
    %cst_34 = arith.constant 9.99999974E-6 : f32
    %104 = vector.broadcast %cst_34 : f32 to vector<8x1xf32>
    %105 = arith.addf %101, %104 : vector<8x1xf32>
    %106 = math.rsqrt %105 : vector<8x1xf32>
    %107 = vector.broadcast %106 : vector<8x1xf32> to vector<8x32xf32>
    %108 = arith.mulf %103, %107 : vector<8x32xf32>
    %109 = vector.broadcast %88 : vector<1x32xf32> to vector<8x32xf32>
    %110 = arith.mulf %108, %109 : vector<8x32xf32>
    %111 = vector.broadcast %90 : vector<1x32xf32> to vector<8x32xf32>
    %112 = arith.addf %110, %111 : vector<8x32xf32>
    %113 = arith.truncf %112 : vector<8x32xf32> to vector<8x32xbf16>
    %c0_35 = arith.constant 0 : index
    %c0_36 = arith.constant 0 : index
    %c0_37 = arith.constant 0 : index
    %114 = vector.load %arg9[%c0_35, %c0_36, %c0_37] : memref<2x32x128xbf16, #tpu.memory_space<vmem>>, vector<1x32x128xbf16>
    %115 = vector.shape_cast %114 : vector<1x32x128xbf16> to vector<32x128xbf16>
    %cst_38 = arith.constant dense<0.000000e+00> : vector<8x128xf32>
    %116 = tpu.matmul %113, %115, %cst_38 {dimension_numbers = #tpu.dot_dimension_numbers<[1], [0], [0], [1], [0, 0, 1, 1], [], []>} : vector<8x32xbf16>, vector<32x128xbf16>, vector<8x128xf32> -> vector<8x128xf32>
    %c0_39 = arith.constant 0 : index
    %c0_40 = arith.constant 0 : index
    %c0_41 = arith.constant 0 : index
    %117 = vector.load %arg10[%c0_39, %c0_40, %c0_41] : memref<2x1x128xf32, #tpu.memory_space<vmem>>, vector<1x1x128xf32>
    %118 = vector.shape_cast %117 : vector<1x1x128xf32> to vector<1x128xf32>
    %119 = vector.broadcast %118 : vector<1x128xf32> to vector<8x128xf32>
    %120 = arith.addf %116, %119 : vector<8x128xf32>
    %cst_42 = arith.constant 5.000000e-01 : f32
    %121 = vector.broadcast %cst_42 : f32 to vector<8x128xf32>
    %122 = arith.mulf %121, %120 : vector<8x128xf32>
    %cst_43 = arith.constant 0.707106769 : f32
    %123 = vector.broadcast %cst_43 : f32 to vector<8x128xf32>
    %124 = arith.mulf %120, %123 : vector<8x128xf32>
    %125 = math.erf %124 : vector<8x128xf32>
    %cst_44 = arith.constant 1.000000e+00 : f32
    %126 = vector.broadcast %cst_44 : f32 to vector<8x128xf32>
    %127 = arith.addf %126, %125 : vector<8x128xf32>
    %128 = arith.mulf %122, %127 : vector<8x128xf32>
    %129 = arith.truncf %128 : vector<8x128xf32> to vector<8x128xbf16>
    %c0_45 = arith.constant 0 : index
    %c0_46 = arith.constant 0 : index
    %c0_47 = arith.constant 0 : index
    %130 = vector.load %arg11[%c0_45, %c0_46, %c0_47] : memref<2x128x32xbf16, #tpu.memory_space<vmem>>, vector<1x128x32xbf16>
    %131 = vector.shape_cast %130 : vector<1x128x32xbf16> to vector<128x32xbf16>
    %cst_48 = arith.constant dense<0.000000e+00> : vector<8x32xf32>
    %132 = tpu.matmul %129, %131, %cst_48 {dimension_numbers = #tpu.dot_dimension_numbers<[1], [0], [0], [1], [0, 0, 1, 1], [], []>} : vector<8x128xbf16>, vector<128x32xbf16>, vector<8x32xf32> -> vector<8x32xf32>
    %c0_49 = arith.constant 0 : index
    %c0_50 = arith.constant 0 : index
    %c0_51 = arith.constant 0 : index
    %133 = vector.load %arg12[%c0_49, %c0_50, %c0_51] : memref<2x1x32xf32, #tpu.memory_space<vmem>>, vector<1x1x32xf32>
    %134 = vector.shape_cast %133 : vector<1x1x32xf32> to vector<1x32xf32>
    %135 = vector.broadcast %134 : vector<1x32xf32> to vector<8x32xf32>
    %136 = arith.addf %132, %135 : vector<8x32xf32>
    %137 = arith.addf %112, %136 : vector<8x32xf32>
    %c0_52 = arith.constant 0 : index
    %c0_53 = arith.constant 0 : index
    %c0_54 = arith.constant 0 : index
    %138 = vector.load %arg13[%c0_52, %c0_53, %c0_54] : memref<2x1x32xf32, #tpu.memory_space<vmem>>, vector<1x1x32xf32>
    %139 = vector.shape_cast %138 : vector<1x1x32xf32> to vector<1x32xf32>
    %c0_55 = arith.constant 0 : index
    %c0_56 = arith.constant 0 : index
    %c0_57 = arith.constant 0 : index
    %140 = vector.load %arg14[%c0_55, %c0_56, %c0_57] : memref<2x1x32xf32, #tpu.memory_space<vmem>>, vector<1x1x32xf32>
    %141 = vector.shape_cast %140 : vector<1x1x32xf32> to vector<1x32xf32>
    %cst_58 = arith.constant dense<0.000000e+00> : vector<8xf32>
    %142 = vector.multi_reduction <add>, %137, %cst_58 [1] : vector<8x32xf32> to vector<8xf32>
    %143 = vector.shape_cast %142 : vector<8xf32> to vector<8x1xf32>
    %cst_59 = arith.constant 3.200000e+01 : f32
    %144 = vector.broadcast %cst_59 : f32 to vector<8x1xf32>
    %145 = arith.divf %143, %144 : vector<8x1xf32>
    %146 = vector.broadcast %145 : vector<8x1xf32> to vector<8x32xf32>
    %147 = arith.subf %137, %146 : vector<8x32xf32>
    %148 = arith.mulf %147, %147 : vector<8x32xf32>
    %cst_60 = arith.constant dense<0.000000e+00> : vector<8xf32>
    %149 = vector.multi_reduction <add>, %148, %cst_60 [1] : vector<8x32xf32> to vector<8xf32>
    %150 = vector.shape_cast %149 : vector<8xf32> to vector<8x1xf32>
    %cst_61 = arith.constant 3.200000e+01 : f32
    %151 = vector.broadcast %cst_61 : f32 to vector<8x1xf32>
    %152 = arith.divf %150, %151 : vector<8x1xf32>
    %153 = vector.broadcast %145 : vector<8x1xf32> to vector<8x32xf32>
    %154 = arith.subf %137, %153 : vector<8x32xf32>
    %cst_62 = arith.constant 9.99999974E-6 : f32
    %155 = vector.broadcast %cst_62 : f32 to vector<8x1xf32>
    %156 = arith.addf %152, %155 : vector<8x1xf32>
    %157 = math.rsqrt %156 : vector<8x1xf32>
    %158 = vector.broadcast %157 : vector<8x1xf32> to vector<8x32xf32>
    %159 = arith.mulf %154, %158 : vector<8x32xf32>
    %160 = vector.broadcast %139 : vector<1x32xf32> to vector<8x32xf32>
    %161 = arith.mulf %159, %160 : vector<8x32xf32>
    %162 = vector.broadcast %141 : vector<1x32xf32> to vector<8x32xf32>
    %163 = arith.addf %161, %162 : vector<8x32xf32>
    %164 = arith.truncf %163 : vector<8x32xf32> to vector<8x32xbf16>
    %c1 = arith.constant 1 : index
    %c0_63 = arith.constant 0 : index
    %c0_64 = arith.constant 0 : index
    %165 = vector.load %arg3[%c1, %c0_63, %c0_64] : memref<2x32x96xbf16, #tpu.memory_space<vmem>>, vector<1x32x96xbf16>
    %166 = vector.shape_cast %165 : vector<1x32x96xbf16> to vector<32x96xbf16>
    %cst_65 = arith.constant dense<0.000000e+00> : vector<8x96xf32>
    %167 = tpu.matmul %164, %166, %cst_65 {dimension_numbers = #tpu.dot_dimension_numbers<[1], [0], [0], [1], [0, 0, 1, 1], [], []>} : vector<8x32xbf16>, vector<32x96xbf16>, vector<8x96xf32> -> vector<8x96xf32>
    %c1_66 = arith.constant 1 : index
    %c0_67 = arith.constant 0 : index
    %c0_68 = arith.constant 0 : index
    %168 = vector.load %arg4[%c1_66, %c0_67, %c0_68] : memref<2x1x96xf32, #tpu.memory_space<vmem>>, vector<1x1x96xf32>
    %169 = vector.shape_cast %168 : vector<1x1x96xf32> to vector<1x96xf32>
    %170 = vector.broadcast %169 : vector<1x96xf32> to vector<8x96xf32>
    %171 = arith.addf %167, %170 : vector<8x96xf32>
    %172 = vector.extract_strided_slice %171 {offsets = [0, 0], sizes = [8, 32], strides = [1, 1]} : vector<8x96xf32> to vector<8x32xf32>
    %173 = vector.extract_strided_slice %171 {offsets = [0, 32], sizes = [8, 32], strides = [1, 1]} : vector<8x96xf32> to vector<8x32xf32>
    %174 = vector.extract_strided_slice %171 {offsets = [0, 64], sizes = [8, 32], strides = [1, 1]} : vector<8x96xf32> to vector<8x32xf32>
    %175 = vector.extract_strided_slice %172 {offsets = [0, 0], sizes = [8, 8], strides = [1, 1]} : vector<8x32xf32> to vector<8x8xf32>
    %176 = vector.extract_strided_slice %172 {offsets = [0, 8], sizes = [8, 8], strides = [1, 1]} : vector<8x32xf32> to vector<8x8xf32>
    %177 = vector.extract_strided_slice %172 {offsets = [0, 16], sizes = [8, 8], strides = [1, 1]} : vector<8x32xf32> to vector<8x8xf32>
    %178 = vector.extract_strided_slice %172 {offsets = [0, 24], sizes = [8, 8], strides = [1, 1]} : vector<8x32xf32> to vector<8x8xf32>
    %179 = vector.shape_cast %175 : vector<8x8xf32> to vector<1x8x8xf32>
    %180 = vector.shape_cast %176 : vector<8x8xf32> to vector<1x8x8xf32>
    %181 = vector.shape_cast %177 : vector<8x8xf32> to vector<1x8x8xf32>
    %182 = vector.shape_cast %178 : vector<8x8xf32> to vector<1x8x8xf32>
    %183 = tpu.concatenate %179, %180, %181, %182 in 0 : vector<1x8x8xf32>, vector<1x8x8xf32>, vector<1x8x8xf32>, vector<1x8x8xf32> -> vector<4x8x8xf32>
    %184 = vector.extract_strided_slice %173 {offsets = [0, 0], sizes = [8, 8], strides = [1, 1]} : vector<8x32xf32> to vector<8x8xf32>
    %185 = vector.extract_strided_slice %173 {offsets = [0, 8], sizes = [8, 8], strides = [1, 1]} : vector<8x32xf32> to vector<8x8xf32>
    %186 = vector.extract_strided_slice %173 {offsets = [0, 16], sizes = [8, 8], strides = [1, 1]} : vector<8x32xf32> to vector<8x8xf32>
    %187 = vector.extract_strided_slice %173 {offsets = [0, 24], sizes = [8, 8], strides = [1, 1]} : vector<8x32xf32> to vector<8x8xf32>
    %188 = vector.shape_cast %184 : vector<8x8xf32> to vector<1x8x8xf32>
    %189 = vector.shape_cast %185 : vector<8x8xf32> to vector<1x8x8xf32>
    %190 = vector.shape_cast %186 : vector<8x8xf32> to vector<1x8x8xf32>
    %191 = vector.shape_cast %187 : vector<8x8xf32> to vector<1x8x8xf32>
    %192 = tpu.concatenate %188, %189, %190, %191 in 0 : vector<1x8x8xf32>, vector<1x8x8xf32>, vector<1x8x8xf32>, vector<1x8x8xf32> -> vector<4x8x8xf32>
    %193 = vector.extract_strided_slice %174 {offsets = [0, 0], sizes = [8, 8], strides = [1, 1]} : vector<8x32xf32> to vector<8x8xf32>
    %194 = vector.extract_strided_slice %174 {offsets = [0, 8], sizes = [8, 8], strides = [1, 1]} : vector<8x32xf32> to vector<8x8xf32>
    %195 = vector.extract_strided_slice %174 {offsets = [0, 16], sizes = [8, 8], strides = [1, 1]} : vector<8x32xf32> to vector<8x8xf32>
    %196 = vector.extract_strided_slice %174 {offsets = [0, 24], sizes = [8, 8], strides = [1, 1]} : vector<8x32xf32> to vector<8x8xf32>
    %197 = vector.shape_cast %193 : vector<8x8xf32> to vector<1x8x8xf32>
    %198 = vector.shape_cast %194 : vector<8x8xf32> to vector<1x8x8xf32>
    %199 = vector.shape_cast %195 : vector<8x8xf32> to vector<1x8x8xf32>
    %200 = vector.shape_cast %196 : vector<8x8xf32> to vector<1x8x8xf32>
    %201 = tpu.concatenate %197, %198, %199, %200 in 0 : vector<1x8x8xf32>, vector<1x8x8xf32>, vector<1x8x8xf32>, vector<1x8x8xf32> -> vector<4x8x8xf32>
    %202 = arith.truncf %183 : vector<4x8x8xf32> to vector<4x8x8xbf16>
    %203 = arith.truncf %192 : vector<4x8x8xf32> to vector<4x8x8xbf16>
    "tpu.trace_start"() <{level = 10 : i32, message = "hqd,hkd->hqk"}> : () -> ()
    %cst_69 = arith.constant dense<0.000000e+00> : vector<4x8x8xf32>
    %204 = tpu.matmul %202, %203, %cst_69 {dimension_numbers = #tpu.dot_dimension_numbers<[2], [2], [1], [1], [0, 0, 0, 1, 1, 1], [0], [0]>} : vector<4x8x8xbf16>, vector<4x8x8xbf16>, vector<4x8x8xf32> -> vector<4x8x8xf32>
    "tpu.trace_stop"() : () -> ()
    %205 = vector.broadcast %12 : vector<1x8x8xf32> to vector<4x8x8xf32>
    %206 = arith.addf %204, %205 : vector<4x8x8xf32>
    %cst_70 = arith.constant dense<0xFF800000> : vector<4x8xf32>
    %207 = vector.multi_reduction <maximumf>, %206, %cst_70 [2] : vector<4x8x8xf32> to vector<4x8xf32>
    %208 = vector.shape_cast %207 : vector<4x8xf32> to vector<4x8x1xf32>
    %209 = vector.broadcast %208 : vector<4x8x1xf32> to vector<4x8x8xf32>
    %210 = arith.subf %206, %209 : vector<4x8x8xf32>
    %211 = math.exp %210 : vector<4x8x8xf32>
    %cst_71 = arith.constant dense<0.000000e+00> : vector<4x8xf32>
    %212 = vector.multi_reduction <add>, %211, %cst_71 [2] : vector<4x8x8xf32> to vector<4x8xf32>
    %213 = vector.shape_cast %212 : vector<4x8xf32> to vector<4x8x1xf32>
    %214 = tpu.reciprocal %213 {approx = true} : vector<4x8x1xf32> -> vector<4x8x1xf32>
    %215 = vector.broadcast %214 : vector<4x8x1xf32> to vector<4x8x8xf32>
    %216 = arith.mulf %211, %215 : vector<4x8x8xf32>
    %217 = arith.truncf %216 : vector<4x8x8xf32> to vector<4x8x8xbf16>
    %218 = arith.truncf %201 : vector<4x8x8xf32> to vector<4x8x8xbf16>
    "tpu.trace_start"() <{level = 10 : i32, message = "hqk,hkd->hqd"}> : () -> ()
    %cst_72 = arith.constant dense<0.000000e+00> : vector<4x8x8xf32>
    %219 = tpu.matmul %217, %218, %cst_72 {dimension_numbers = #tpu.dot_dimension_numbers<[2], [1], [1], [2], [0, 0, 0, 1, 1, 2], [0], [0]>} : vector<4x8x8xbf16>, vector<4x8x8xbf16>, vector<4x8x8xf32> -> vector<4x8x8xf32>
    "tpu.trace_stop"() : () -> ()
    %220 = vector.extract_strided_slice %219 {offsets = [0, 0, 0], sizes = [1, 8, 8], strides = [1, 1, 1]} : vector<4x8x8xf32> to vector<1x8x8xf32>
    %221 = vector.shape_cast %220 : vector<1x8x8xf32> to vector<8x8xf32>
    %222 = vector.extract_strided_slice %219 {offsets = [1, 0, 0], sizes = [1, 8, 8], strides = [1, 1, 1]} : vector<4x8x8xf32> to vector<1x8x8xf32>
    %223 = vector.shape_cast %222 : vector<1x8x8xf32> to vector<8x8xf32>
    %224 = vector.extract_strided_slice %219 {offsets = [2, 0, 0], sizes = [1, 8, 8], strides = [1, 1, 1]} : vector<4x8x8xf32> to vector<1x8x8xf32>
    %225 = vector.shape_cast %224 : vector<1x8x8xf32> to vector<8x8xf32>
    %226 = vector.extract_strided_slice %219 {offsets = [3, 0, 0], sizes = [1, 8, 8], strides = [1, 1, 1]} : vector<4x8x8xf32> to vector<1x8x8xf32>
    %227 = vector.shape_cast %226 : vector<1x8x8xf32> to vector<8x8xf32>
    %228 = tpu.concatenate %221, %223, %225, %227 in 1 : vector<8x8xf32>, vector<8x8xf32>, vector<8x8xf32>, vector<8x8xf32> -> vector<8x32xf32>
    %229 = arith.truncf %228 : vector<8x32xf32> to vector<8x32xbf16>
    %c1_73 = arith.constant 1 : index
    %c0_74 = arith.constant 0 : index
    %c0_75 = arith.constant 0 : index
    %230 = vector.load %arg5[%c1_73, %c0_74, %c0_75] : memref<2x32x32xbf16, #tpu.memory_space<vmem>>, vector<1x32x32xbf16>
    %231 = vector.shape_cast %230 : vector<1x32x32xbf16> to vector<32x32xbf16>
    %cst_76 = arith.constant dense<0.000000e+00> : vector<8x32xf32>
    %232 = tpu.matmul %229, %231, %cst_76 {dimension_numbers = #tpu.dot_dimension_numbers<[1], [0], [0], [1], [0, 0, 1, 1], [], []>} : vector<8x32xbf16>, vector<32x32xbf16>, vector<8x32xf32> -> vector<8x32xf32>
    %c1_77 = arith.constant 1 : index
    %c0_78 = arith.constant 0 : index
    %c0_79 = arith.constant 0 : index
    %233 = vector.load %arg6[%c1_77, %c0_78, %c0_79] : memref<2x1x32xf32, #tpu.memory_space<vmem>>, vector<1x1x32xf32>
    %234 = vector.shape_cast %233 : vector<1x1x32xf32> to vector<1x32xf32>
    %235 = vector.broadcast %234 : vector<1x32xf32> to vector<8x32xf32>
    %236 = arith.addf %232, %235 : vector<8x32xf32>
    %237 = arith.addf %163, %236 : vector<8x32xf32>
    %c1_80 = arith.constant 1 : index
    %c0_81 = arith.constant 0 : index
    %c0_82 = arith.constant 0 : index
    %238 = vector.load %arg7[%c1_80, %c0_81, %c0_82] : memref<2x1x32xf32, #tpu.memory_space<vmem>>, vector<1x1x32xf32>
    %239 = vector.shape_cast %238 : vector<1x1x32xf32> to vector<1x32xf32>
    %c1_83 = arith.constant 1 : index
    %c0_84 = arith.constant 0 : index
    %c0_85 = arith.constant 0 : index
    %240 = vector.load %arg8[%c1_83, %c0_84, %c0_85] : memref<2x1x32xf32, #tpu.memory_space<vmem>>, vector<1x1x32xf32>
    %241 = vector.shape_cast %240 : vector<1x1x32xf32> to vector<1x32xf32>
    %cst_86 = arith.constant dense<0.000000e+00> : vector<8xf32>
    %242 = vector.multi_reduction <add>, %237, %cst_86 [1] : vector<8x32xf32> to vector<8xf32>
    %243 = vector.shape_cast %242 : vector<8xf32> to vector<8x1xf32>
    %cst_87 = arith.constant 3.200000e+01 : f32
    %244 = vector.broadcast %cst_87 : f32 to vector<8x1xf32>
    %245 = arith.divf %243, %244 : vector<8x1xf32>
    %246 = vector.broadcast %245 : vector<8x1xf32> to vector<8x32xf32>
    %247 = arith.subf %237, %246 : vector<8x32xf32>
    %248 = arith.mulf %247, %247 : vector<8x32xf32>
    %cst_88 = arith.constant dense<0.000000e+00> : vector<8xf32>
    %249 = vector.multi_reduction <add>, %248, %cst_88 [1] : vector<8x32xf32> to vector<8xf32>
    %250 = vector.shape_cast %249 : vector<8xf32> to vector<8x1xf32>
    %cst_89 = arith.constant 3.200000e+01 : f32
    %251 = vector.broadcast %cst_89 : f32 to vector<8x1xf32>
    %252 = arith.divf %250, %251 : vector<8x1xf32>
    %253 = vector.broadcast %245 : vector<8x1xf32> to vector<8x32xf32>
    %254 = arith.subf %237, %253 : vector<8x32xf32>
    %cst_90 = arith.constant 9.99999974E-6 : f32
    %255 = vector.broadcast %cst_90 : f32 to vector<8x1xf32>
    %256 = arith.addf %252, %255 : vector<8x1xf32>
    %257 = math.rsqrt %256 : vector<8x1xf32>
    %258 = vector.broadcast %257 : vector<8x1xf32> to vector<8x32xf32>
    %259 = arith.mulf %254, %258 : vector<8x32xf32>
    %260 = vector.broadcast %239 : vector<1x32xf32> to vector<8x32xf32>
    %261 = arith.mulf %259, %260 : vector<8x32xf32>
    %262 = vector.broadcast %241 : vector<1x32xf32> to vector<8x32xf32>
    %263 = arith.addf %261, %262 : vector<8x32xf32>
    %264 = arith.truncf %263 : vector<8x32xf32> to vector<8x32xbf16>
    %c1_91 = arith.constant 1 : index
    %c0_92 = arith.constant 0 : index
    %c0_93 = arith.constant 0 : index
    %265 = vector.load %arg9[%c1_91, %c0_92, %c0_93] : memref<2x32x128xbf16, #tpu.memory_space<vmem>>, vector<1x32x128xbf16>
    %266 = vector.shape_cast %265 : vector<1x32x128xbf16> to vector<32x128xbf16>
    %cst_94 = arith.constant dense<0.000000e+00> : vector<8x128xf32>
    %267 = tpu.matmul %264, %266, %cst_94 {dimension_numbers = #tpu.dot_dimension_numbers<[1], [0], [0], [1], [0, 0, 1, 1], [], []>} : vector<8x32xbf16>, vector<32x128xbf16>, vector<8x128xf32> -> vector<8x128xf32>
    %c1_95 = arith.constant 1 : index
    %c0_96 = arith.constant 0 : index
    %c0_97 = arith.constant 0 : index
    %268 = vector.load %arg10[%c1_95, %c0_96, %c0_97] : memref<2x1x128xf32, #tpu.memory_space<vmem>>, vector<1x1x128xf32>
    %269 = vector.shape_cast %268 : vector<1x1x128xf32> to vector<1x128xf32>
    %270 = vector.broadcast %269 : vector<1x128xf32> to vector<8x128xf32>
    %271 = arith.addf %267, %270 : vector<8x128xf32>
    %cst_98 = arith.constant 5.000000e-01 : f32
    %272 = vector.broadcast %cst_98 : f32 to vector<8x128xf32>
    %273 = arith.mulf %272, %271 : vector<8x128xf32>
    %cst_99 = arith.constant 0.707106769 : f32
    %274 = vector.broadcast %cst_99 : f32 to vector<8x128xf32>
    %275 = arith.mulf %271, %274 : vector<8x128xf32>
    %276 = math.erf %275 : vector<8x128xf32>
    %cst_100 = arith.constant 1.000000e+00 : f32
    %277 = vector.broadcast %cst_100 : f32 to vector<8x128xf32>
    %278 = arith.addf %277, %276 : vector<8x128xf32>
    %279 = arith.mulf %273, %278 : vector<8x128xf32>
    %280 = arith.truncf %279 : vector<8x128xf32> to vector<8x128xbf16>
    %c1_101 = arith.constant 1 : index
    %c0_102 = arith.constant 0 : index
    %c0_103 = arith.constant 0 : index
    %281 = vector.load %arg11[%c1_101, %c0_102, %c0_103] : memref<2x128x32xbf16, #tpu.memory_space<vmem>>, vector<1x128x32xbf16>
    %282 = vector.shape_cast %281 : vector<1x128x32xbf16> to vector<128x32xbf16>
    %cst_104 = arith.constant dense<0.000000e+00> : vector<8x32xf32>
    %283 = tpu.matmul %280, %282, %cst_104 {dimension_numbers = #tpu.dot_dimension_numbers<[1], [0], [0], [1], [0, 0, 1, 1], [], []>} : vector<8x128xbf16>, vector<128x32xbf16>, vector<8x32xf32> -> vector<8x32xf32>
    %c1_105 = arith.constant 1 : index
    %c0_106 = arith.constant 0 : index
    %c0_107 = arith.constant 0 : index
    %284 = vector.load %arg12[%c1_105, %c0_106, %c0_107] : memref<2x1x32xf32, #tpu.memory_space<vmem>>, vector<1x1x32xf32>
    %285 = vector.shape_cast %284 : vector<1x1x32xf32> to vector<1x32xf32>
    %286 = vector.broadcast %285 : vector<1x32xf32> to vector<8x32xf32>
    %287 = arith.addf %283, %286 : vector<8x32xf32>
    %288 = arith.addf %263, %287 : vector<8x32xf32>
    %c1_108 = arith.constant 1 : index
    %c0_109 = arith.constant 0 : index
    %c0_110 = arith.constant 0 : index
    %289 = vector.load %arg13[%c1_108, %c0_109, %c0_110] : memref<2x1x32xf32, #tpu.memory_space<vmem>>, vector<1x1x32xf32>
    %290 = vector.shape_cast %289 : vector<1x1x32xf32> to vector<1x32xf32>
    %c1_111 = arith.constant 1 : index
    %c0_112 = arith.constant 0 : index
    %c0_113 = arith.constant 0 : index
    %291 = vector.load %arg14[%c1_111, %c0_112, %c0_113] : memref<2x1x32xf32, #tpu.memory_space<vmem>>, vector<1x1x32xf32>
    %292 = vector.shape_cast %291 : vector<1x1x32xf32> to vector<1x32xf32>
    %cst_114 = arith.constant dense<0.000000e+00> : vector<8xf32>
    %293 = vector.multi_reduction <add>, %288, %cst_114 [1] : vector<8x32xf32> to vector<8xf32>
    %294 = vector.shape_cast %293 : vector<8xf32> to vector<8x1xf32>
    %cst_115 = arith.constant 3.200000e+01 : f32
    %295 = vector.broadcast %cst_115 : f32 to vector<8x1xf32>
    %296 = arith.divf %294, %295 : vector<8x1xf32>
    %297 = vector.broadcast %296 : vector<8x1xf32> to vector<8x32xf32>
    %298 = arith.subf %288, %297 : vector<8x32xf32>
    %299 = arith.mulf %298, %298 : vector<8x32xf32>
    %cst_116 = arith.constant dense<0.000000e+00> : vector<8xf32>
    %300 = vector.multi_reduction <add>, %299, %cst_116 [1] : vector<8x32xf32> to vector<8xf32>
    %301 = vector.shape_cast %300 : vector<8xf32> to vector<8x1xf32>
    %cst_117 = arith.constant 3.200000e+01 : f32
    %302 = vector.broadcast %cst_117 : f32 to vector<8x1xf32>
    %303 = arith.divf %301, %302 : vector<8x1xf32>
    %304 = vector.broadcast %296 : vector<8x1xf32> to vector<8x32xf32>
    %305 = arith.subf %288, %304 : vector<8x32xf32>
    %cst_118 = arith.constant 9.99999974E-6 : f32
    %306 = vector.broadcast %cst_118 : f32 to vector<8x1xf32>
    %307 = arith.addf %303, %306 : vector<8x1xf32>
    %308 = math.rsqrt %307 : vector<8x1xf32>
    %309 = vector.broadcast %308 : vector<8x1xf32> to vector<8x32xf32>
    %310 = arith.mulf %305, %309 : vector<8x32xf32>
    %311 = vector.broadcast %290 : vector<1x32xf32> to vector<8x32xf32>
    %312 = arith.mulf %310, %311 : vector<8x32xf32>
    %313 = vector.broadcast %292 : vector<1x32xf32> to vector<8x32xf32>
    %314 = arith.addf %312, %313 : vector<8x32xf32>
    %c0_119 = arith.constant 0 : index
    %c0_120 = arith.constant 0 : index
    %c0_121 = arith.constant 0 : index
    %315 = vector.load %arg15[%c0_119, %c0_120, %c0_121] : memref<1x8x32xf32, #tpu.memory_space<vmem>>, vector<1x8x32xf32>
    %316 = vector.shape_cast %315 : vector<1x8x32xf32> to vector<8x32xf32>
    %317 = vector.shape_cast %314 : vector<8x32xf32> to vector<1x8x32xf32>
    tpu.vector_store %arg15[%c0_119, %c0_120, %c0_121], %317 {strides = array<i32>} : memref<1x8x32xf32, #tpu.memory_space<vmem>>, vector<1x8x32xf32>,
    return
  }
  func.func @transform_0(%arg0: i32) -> (i32, i32, i32) {
    %c0_i32 = arith.constant 0 : i32
    %c0_i32_0 = arith.constant 0 : i32
    %c0_i32_1 = arith.constant 0 : i32
    return %arg0, %c0_i32, %c0_i32_0 : i32, i32, i32
  }
  func.func @transform_1(%arg0: i32) -> (i32, i32, i32) {
    %c0_i32 = arith.constant 0 : i32
    %c0_i32_0 = arith.constant 0 : i32
    %c0_i32_1 = arith.constant 0 : i32
    return %arg0, %c0_i32, %c0_i32_0 : i32, i32, i32
  }
  func.func @transform_2(%arg0: i32) -> (i32, i32, i32) {
    %c0_i32 = arith.constant 0 : i32
    %c0_i32_0 = arith.constant 0 : i32
    %c0_i32_1 = arith.constant 0 : i32
    %c0_i32_2 = arith.constant 0 : i32
    return %c0_i32, %c0_i32_0, %c0_i32_1 : i32, i32, i32
  }
  func.func @transform_3(%arg0: i32) -> (i32, i32, i32) {
    %c0_i32 = arith.constant 0 : i32
    %c0_i32_0 = arith.constant 0 : i32
    %c0_i32_1 = arith.constant 0 : i32
    %c0_i32_2 = arith.constant 0 : i32
    return %c0_i32, %c0_i32_0, %c0_i32_1 : i32, i32, i32
  }
  func.func @transform_4(%arg0: i32) -> (i32, i32, i32) {
    %c0_i32 = arith.constant 0 : i32
    %c0_i32_0 = arith.constant 0 : i32
    %c0_i32_1 = arith.constant 0 : i32
    %c0_i32_2 = arith.constant 0 : i32
    return %c0_i32, %c0_i32_0, %c0_i32_1 : i32, i32, i32
  }
  func.func @transform_5(%arg0: i32) -> (i32, i32, i32) {
    %c0_i32 = arith.constant 0 : i32
    %c0_i32_0 = arith.constant 0 : i32
    %c0_i32_1 = arith.constant 0 : i32
    %c0_i32_2 = arith.constant 0 : i32
    return %c0_i32, %c0_i32_0, %c0_i32_1 : i32, i32, i32
  }
  func.func @transform_6(%arg0: i32) -> (i32, i32, i32) {
    %c0_i32 = arith.constant 0 : i32
    %c0_i32_0 = arith.constant 0 : i32
    %c0_i32_1 = arith.constant 0 : i32
    %c0_i32_2 = arith.constant 0 : i32
    return %c0_i32, %c0_i32_0, %c0_i32_1 : i32, i32, i32
  }
  func.func @transform_7(%arg0: i32) -> (i32, i32, i32) {
    %c0_i32 = arith.constant 0 : i32
    %c0_i32_0 = arith.constant 0 : i32
    %c0_i32_1 = arith.constant 0 : i32
    %c0_i32_2 = arith.constant 0 : i32
    return %c0_i32, %c0_i32_0, %c0_i32_1 : i32, i32, i32
  }
  func.func @transform_8(%arg0: i32) -> (i32, i32, i32) {
    %c0_i32 = arith.constant 0 : i32
    %c0_i32_0 = arith.constant 0 : i32
    %c0_i32_1 = arith.constant 0 : i32
    %c0_i32_2 = arith.constant 0 : i32
    return %c0_i32, %c0_i32_0, %c0_i32_1 : i32, i32, i32
  }
  func.func @transform_9(%arg0: i32) -> (i32, i32, i32) {
    %c0_i32 = arith.constant 0 : i32
    %c0_i32_0 = arith.constant 0 : i32
    %c0_i32_1 = arith.constant 0 : i32
    %c0_i32_2 = arith.constant 0 : i32
    return %c0_i32, %c0_i32_0, %c0_i32_1 : i32, i32, i32
  }
  func.func @transform_10(%arg0: i32) -> (i32, i32, i32) {
    %c0_i32 = arith.constant 0 : i32
    %c0_i32_0 = arith.constant 0 : i32
    %c0_i32_1 = arith.constant 0 : i32
    %c0_i32_2 = arith.constant 0 : i32
    return %c0_i32, %c0_i32_0, %c0_i32_1 : i32, i32, i32
  }
  func.func @transform_11(%arg0: i32) -> (i32, i32, i32) {
    %c0_i32 = arith.constant 0 : i32
    %c0_i32_0 = arith.constant 0 : i32
    %c0_i32_1 = arith.constant 0 : i32
    %c0_i32_2 = arith.constant 0 : i32
    return %c0_i32, %c0_i32_0, %c0_i32_1 : i32, i32, i32
  }
  func.func @transform_12(%arg0: i32) -> (i32, i32, i32) {
    %c0_i32 = arith.constant 0 : i32
    %c0_i32_0 = arith.constant 0 : i32
    %c0_i32_1 = arith.constant 0 : i32
    %c0_i32_2 = arith.constant 0 : i32
    return %c0_i32, %c0_i32_0, %c0_i32_1 : i32, i32, i32
  }
  func.func @transform_13(%arg0: i32) -> (i32, i32, i32) {
    %c0_i32 = arith.constant 0 : i32
    %c0_i32_0 = arith.constant 0 : i32
    %c0_i32_1 = arith.constant 0 : i32
    %c0_i32_2 = arith.constant 0 : i32
    return %c0_i32, %c0_i32_0, %c0_i32_1 : i32, i32, i32
  }
  func.func @transform_14(%arg0: i32) -> (i32, i32, i32) {
    %c0_i32 = arith.constant 0 : i32
    %c0_i32_0 = arith.constant 0 : i32
    %c0_i32_1 = arith.constant 0 : i32
    return %arg0, %c0_i32, %c0_i32_0 : i32, i32, i32
  }
}

</mosaic_0001>

<llo_original>
// kernel: decoder_only_forward.1
$region0: #{decoder_only_forward.1}
  #allocation0 [shape = 'u32[]', space=smem, size = 0x4, offset = 0x4, fixed_abs, tag = 'smem constant byte address 0x4 - core index']
  #allocation1 [shape = 'u32[144,128]{1,0:T(1,128)}', space=vmem, size = 0x12000, scoped, tag = 'internal scratch']
  %s0 = inlined_call_operand.vmem [shape: f32[2,8,32], index: 0, kind: input, shape index: {}]
  %s1 = inlined_call_operand.vmem [shape: f32[2,1,8], index: 1, kind: input, shape index: {}]
  %s2 = inlined_call_operand.vmem [shape: bf16[2,32,96], index: 2, kind: input, shape index: {}]
  %s3 = inlined_call_operand.vmem [shape: f32[2,1,96], index: 3, kind: input, shape index: {}]
  %s4 = inlined_call_operand.vmem [shape: bf16[2,32,32], index: 4, kind: input, shape index: {}]
  %s5 = inlined_call_operand.vmem [shape: f32[2,1,32], index: 5, kind: input, shape index: {}]
  %s6 = inlined_call_operand.vmem [shape: f32[2,1,32], index: 6, kind: input, shape index: {}]
  %s7 = inlined_call_operand.vmem [shape: f32[2,1,32], index: 7, kind: input, shape index: {}]
  %s8 = inlined_call_operand.vmem [shape: bf16[2,32,128], index: 8, kind: input, shape index: {}]
  %s9 = inlined_call_operand.vmem [shape: f32[2,1,128], index: 9, kind: input, shape index: {}]
  %s10 = inlined_call_operand.vmem [shape: bf16[2,128,32], index: 10, kind: input, shape index: {}]
  %s11 = inlined_call_operand.vmem [shape: f32[2,1,32], index: 11, kind: input, shape index: {}]
  %s12 = inlined_call_operand.vmem [shape: f32[2,1,32], index: 12, kind: input, shape index: {}]
  %s13 = inlined_call_operand.vmem [shape: f32[2,1,32], index: 13, kind: input, shape index: {}]
  %s14 = inlined_call_operand.hbm [shape: f32[2,8,32], index: 14, kind: output, shape index: {}]
  %s15 = sld [smem:[#allocation0]]
  $region89: #{decoder_only_forward.1} parent=0
    _
  %s17 = ssub.s32 1, %s15
  %s18 = scalar_select 0, %s17, %s15
  $region1: #{decoder_only_forward.1} parent=0
    #allocation2 [shape = 'u8[8192]{0}', space=vmem, size = 0x2000, scoped, tag = 'output window, operand 0']
    #allocation3 [shape = 's32[2]{0}', space=sflag, size = 0x8, scoped, tag = 'scoped memory for decoder_only_forward.1']
    %19 = vsyncpa [#allocation3], 0
    %s20 = scalar_lea.sflag [#allocation3], 1
    %21 = vsyncpa %s20, 0
    loop: start=0, step=1, limit=4
    $region2: #{decoder_only_forward.1} parent=1 // loop_pre_header
      _
    $region3: #{decoder_only_forward.1} parent=1 // loop_header
      %s23 = sphi 0, %s27
      %p24 = scmp.ge.s32.totalorder %s23, 4
      %s33 = sphi 0, %s35
      %s36 = sphi 0, %s33
      %s37 = sphi 0, %s36
      %s53 = sphi 0, %s37
      %s59 = sphi 0, %s61
      %s62 = sphi 0, %s59
      %s63 = sphi 0, %s62
      %s79 = sphi 0, %s63
      %s83 = sphi 0, %s83
      %s85 = sphi 0, %s83
      %s86 = sphi 0, %s85
      %s100 = sphi 0, %s86
      %s104 = sphi 0, %s104
      %s106 = sphi 0, %s104
      %s107 = sphi 0, %s106
      %s121 = sphi 0, %s107
      %s125 = sphi 0, %s125
      %s127 = sphi 0, %s125
      %s128 = sphi 0, %s127
      %s142 = sphi 0, %s128
      %s146 = sphi 0, %s146
      %s148 = sphi 0, %s146
      %s149 = sphi 0, %s148
      %s163 = sphi 0, %s149
      %s167 = sphi 0, %s167
      %s169 = sphi 0, %s167
      %s170 = sphi 0, %s169
      %s184 = sphi 0, %s170
      %s188 = sphi 0, %s188
      %s190 = sphi 0, %s188
      %s191 = sphi 0, %s190
      %s205 = sphi 0, %s191
      %s209 = sphi 0, %s209
      %s211 = sphi 0, %s209
      %s212 = sphi 0, %s211
      %s226 = sphi 0, %s212
      %s230 = sphi 0, %s230
      %s232 = sphi 0, %s230
      %s233 = sphi 0, %s232
      %s247 = sphi 0, %s233
      %s251 = sphi 0, %s251
      %s253 = sphi 0, %s251
      %s254 = sphi 0, %s253
      %s268 = sphi 0, %s254
      %s272 = sphi 0, %s272
      %s274 = sphi 0, %s272
      %s275 = sphi 0, %s274
      %s289 = sphi 0, %s275
      %s293 = sphi 0, %s293
      %s295 = sphi 0, %s293
      %s296 = sphi 0, %s295
      %s310 = sphi 0, %s296
      %s314 = sphi 0, %s314
      %s316 = sphi 0, %s314
      %s317 = sphi 0, %s316
      %s331 = sphi 0, %s317
      %s337 = sphi 0, %s339
      %s340 = sphi 0, %s337
      %s341 = sphi 0, %s340
      %s357 = sphi 0, %s341
    $region4: #{decoder_only_forward.1} parent=1 // loop_header_branch
      %26 = sbr.rel (%p24) target = $region8
    $region5: #{decoder_only_forward.1} parent=1 // loop_body
      %s28 = ssub.s32 %s23, 1
      %s29 = ssub.s32 %s23, 2
      %s30 = sadd.s32 %s23, 1
      %s31 = ssub.s32 %s23, %s30
      %p32 = scmp.eq.s32.totalorder %s31, 0
      %s34 = sadd.s32 %s33, 1
      %s35 = scalar_select %p32, %s33, %s34
      %p38 = pneg %p32
      %p39 = scmp.eq.s32.totalorder %s23, 1
      %p40 = por %p38, %p39
      %p41 = scmp.ne.s32.totalorder %s33, %s36
      %p42 = scmp.eq.s32.totalorder %s23, 0
      %p43 = por %p41, %p42
      %p44 = scmp.ne.s32.totalorder %s33, %s36
      %p45 = scmp.eq.s32.totalorder %s28, 1
      %p46 = por %p44, %p45
      %p47 = scmp.ne.s32.totalorder %s36, %s37
      %p48 = scmp.eq.s32.totalorder %s28, 0
      %p49 = por %p47, %p48
      %p50 = scmp.ne.s32.totalorder %s36, %s37
      %p51 = scmp.eq.s32.totalorder %s29, 1
      %p52 = por %p50, %p51
      %p54 = scmp.ne.s32.totalorder %s37, %s53
      %p55 = scmp.eq.s32.totalorder %s29, 0
      %p56 = por %p54, %p55
      %s57 = ssub.s32 %s23, %s30
      %p58 = scmp.eq.s32.totalorder %s57, 0
      %s60 = sadd.s32 %s59, 1
      %s61 = scalar_select %p58, %s59, %s60
      %p64 = pneg %p58
      %p65 = scmp.eq.s32.totalorder %s23, 1
      %p66 = por %p64, %p65
      %p67 = scmp.ne.s32.totalorder %s59, %s62
      %p68 = scmp.eq.s32.totalorder %s23, 0
      %p69 = por %p67, %p68
      %p70 = scmp.ne.s32.totalorder %s59, %s62
      %p71 = scmp.eq.s32.totalorder %s28, 1
      %p72 = por %p70, %p71
      %p73 = scmp.ne.s32.totalorder %s62, %s63
      %p74 = scmp.eq.s32.totalorder %s28, 0
      %p75 = por %p73, %p74
      %p76 = scmp.ne.s32.totalorder %s62, %s63
      %p77 = scmp.eq.s32.totalorder %s29, 1
      %p78 = por %p76, %p77
      %p80 = scmp.ne.s32.totalorder %s63, %s79
      %p81 = scmp.eq.s32.totalorder %s29, 0
      %p82 = por %p80, %p81
      %s84 = sadd.s32 %s83, 1
      %p87 = scmp.eq.s32.totalorder %s23, 1
      %p88 = scmp.ne.s32.totalorder %s83, %s85
      %p89 = scmp.eq.s32.totalorder %s23, 0
      %p90 = por %p88, %p89
      %p91 = scmp.ne.s32.totalorder %s83, %s85
      %p92 = scmp.eq.s32.totalorder %s28, 1
      %p93 = por %p91, %p92
      %p94 = scmp.ne.s32.totalorder %s85, %s86
      %p95 = scmp.eq.s32.totalorder %s28, 0
      %p96 = por %p94, %p95
      %p97 = scmp.ne.s32.totalorder %s85, %s86
      %p98 = scmp.eq.s32.totalorder %s29, 1
      %p99 = por %p97, %p98
      %p101 = scmp.ne.s32.totalorder %s86, %s100
      %p102 = scmp.eq.s32.totalorder %s29, 0
      %p103 = por %p101, %p102
      %s105 = sadd.s32 %s104, 1
      %p108 = scmp.eq.s32.totalorder %s23, 1
      %p109 = scmp.ne.s32.totalorder %s104, %s106
      %p110 = scmp.eq.s32.totalorder %s23, 0
      %p111 = por %p109, %p110
      %p112 = scmp.ne.s32.totalorder %s104, %s106
      %p113 = scmp.eq.s32.totalorder %s28, 1
      %p114 = por %p112, %p113
      %p115 = scmp.ne.s32.totalorder %s106, %s107
      %p116 = scmp.eq.s32.totalorder %s28, 0
      %p117 = por %p115, %p116
      %p118 = scmp.ne.s32.totalorder %s106, %s107
      %p119 = scmp.eq.s32.totalorder %s29, 1
      %p120 = por %p118, %p119
      %p122 = scmp.ne.s32.totalorder %s107, %s121
      %p123 = scmp.eq.s32.totalorder %s29, 0
      %p124 = por %p122, %p123
      %s126 = sadd.s32 %s125, 1
      %p129 = scmp.eq.s32.totalorder %s23, 1
      %p130 = scmp.ne.s32.totalorder %s125, %s127
      %p131 = scmp.eq.s32.totalorder %s23, 0
      %p132 = por %p130, %p131
      %p133 = scmp.ne.s32.totalorder %s125, %s127
      %p134 = scmp.eq.s32.totalorder %s28, 1
      %p135 = por %p133, %p134
      %p136 = scmp.ne.s32.totalorder %s127, %s128
      %p137 = scmp.eq.s32.totalorder %s28, 0
      %p138 = por %p136, %p137
      %p139 = scmp.ne.s32.totalorder %s127, %s128
      %p140 = scmp.eq.s32.totalorder %s29, 1
      %p141 = por %p139, %p140
      %p143 = scmp.ne.s32.totalorder %s128, %s142
      %p144 = scmp.eq.s32.totalorder %s29, 0
      %p145 = por %p143, %p144
      %s147 = sadd.s32 %s146, 1
      %p150 = scmp.eq.s32.totalorder %s23, 1
      %p151 = scmp.ne.s32.totalorder %s146, %s148
      %p152 = scmp.eq.s32.totalorder %s23, 0
      %p153 = por %p151, %p152
      %p154 = scmp.ne.s32.totalorder %s146, %s148
      %p155 = scmp.eq.s32.totalorder %s28, 1
      %p156 = por %p154, %p155
      %p157 = scmp.ne.s32.totalorder %s148, %s149
      %p158 = scmp.eq.s32.totalorder %s28, 0
      %p159 = por %p157, %p158
      %p160 = scmp.ne.s32.totalorder %s148, %s149
      %p161 = scmp.eq.s32.totalorder %s29, 1
      %p162 = por %p160, %p161
      %p164 = scmp.ne.s32.totalorder %s149, %s163
      %p165 = scmp.eq.s32.totalorder %s29, 0
      %p166 = por %p164, %p165
      %s168 = sadd.s32 %s167, 1
      %p171 = scmp.eq.s32.totalorder %s23, 1
      %p172 = scmp.ne.s32.totalorder %s167, %s169
      %p173 = scmp.eq.s32.totalorder %s23, 0
      %p174 = por %p172, %p173
      %p175 = scmp.ne.s32.totalorder %s167, %s169
      %p176 = scmp.eq.s32.totalorder %s28, 1
      %p177 = por %p175, %p176
      %p178 = scmp.ne.s32.totalorder %s169, %s170
      %p179 = scmp.eq.s32.totalorder %s28, 0
      %p180 = por %p178, %p179
      %p181 = scmp.ne.s32.totalorder %s169, %s170
      %p182 = scmp.eq.s32.totalorder %s29, 1
      %p183 = por %p181, %p182
      %p185 = scmp.ne.s32.totalorder %s170, %s184
      %p186 = scmp.eq.s32.totalorder %s29, 0
      %p187 = por %p185, %p186
      %s189 = sadd.s32 %s188, 1
      %p192 = scmp.eq.s32.totalorder %s23, 1
      %p193 = scmp.ne.s32.totalorder %s188, %s190
      %p194 = scmp.eq.s32.totalorder %s23, 0
      %p195 = por %p193, %p194
      %p196 = scmp.ne.s32.totalorder %s188, %s190
      %p197 = scmp.eq.s32.totalorder %s28, 1
      %p198 = por %p196, %p197
      %p199 = scmp.ne.s32.totalorder %s190, %s191
      %p200 = scmp.eq.s32.totalorder %s28, 0
      %p201 = por %p199, %p200
      %p202 = scmp.ne.s32.totalorder %s190, %s191
      %p203 = scmp.eq.s32.totalorder %s29, 1
      %p204 = por %p202, %p203
      %p206 = scmp.ne.s32.totalorder %s191, %s205
      %p207 = scmp.eq.s32.totalorder %s29, 0
      %p208 = por %p206, %p207
      %s210 = sadd.s32 %s209, 1
      %p213 = scmp.eq.s32.totalorder %s23, 1
      %p214 = scmp.ne.s32.totalorder %s209, %s211
      %p215 = scmp.eq.s32.totalorder %s23, 0
      %p216 = por %p214, %p215
      %p217 = scmp.ne.s32.totalorder %s209, %s211
      %p218 = scmp.eq.s32.totalorder %s28, 1
      %p219 = por %p217, %p218
      %p220 = scmp.ne.s32.totalorder %s211, %s212
      %p221 = scmp.eq.s32.totalorder %s28, 0
      %p222 = por %p220, %p221
      %p223 = scmp.ne.s32.totalorder %s211, %s212
      %p224 = scmp.eq.s32.totalorder %s29, 1
      %p225 = por %p223, %p224
      %p227 = scmp.ne.s32.totalorder %s212, %s226
      %p228 = scmp.eq.s32.totalorder %s29, 0
      %p229 = por %p227, %p228
      %s231 = sadd.s32 %s230, 1
      %p234 = scmp.eq.s32.totalorder %s23, 1
      %p235 = scmp.ne.s32.totalorder %s230, %s232
      %p236 = scmp.eq.s32.totalorder %s23, 0
      %p237 = por %p235, %p236
      %p238 = scmp.ne.s32.totalorder %s230, %s232
      %p239 = scmp.eq.s32.totalorder %s28, 1
      %p240 = por %p238, %p239
      %p241 = scmp.ne.s32.totalorder %s232, %s233
      %p242 = scmp.eq.s32.totalorder %s28, 0
      %p243 = por %p241, %p242
      %p244 = scmp.ne.s32.totalorder %s232, %s233
      %p245 = scmp.eq.s32.totalorder %s29, 1
      %p246 = por %p244, %p245
      %p248 = scmp.ne.s32.totalorder %s233, %s247
      %p249 = scmp.eq.s32.totalorder %s29, 0
      %p250 = por %p248, %p249
      %s252 = sadd.s32 %s251, 1
      %p255 = scmp.eq.s32.totalorder %s23, 1
      %p256 = scmp.ne.s32.totalorder %s251, %s253
      %p257 = scmp.eq.s32.totalorder %s23, 0
      %p258 = por %p256, %p257
      %p259 = scmp.ne.s32.totalorder %s251, %s253
      %p260 = scmp.eq.s32.totalorder %s28, 1
      %p261 = por %p259, %p260
      %p262 = scmp.ne.s32.totalorder %s253, %s254
      %p263 = scmp.eq.s32.totalorder %s28, 0
      %p264 = por %p262, %p263
      %p265 = scmp.ne.s32.totalorder %s253, %s254
      %p266 = scmp.eq.s32.totalorder %s29, 1
      %p267 = por %p265, %p266
      %p269 = scmp.ne.s32.totalorder %s254, %s268
      %p270 = scmp.eq.s32.totalorder %s29, 0
      %p271 = por %p269, %p270
      %s273 = sadd.s32 %s272, 1
      %p276 = scmp.eq.s32.totalorder %s23, 1
      %p277 = scmp.ne.s32.totalorder %s272, %s274
      %p278 = scmp.eq.s32.totalorder %s23, 0
      %p279 = por %p277, %p278
      %p280 = scmp.ne.s32.totalorder %s272, %s274
      %p281 = scmp.eq.s32.totalorder %s28, 1
      %p282 = por %p280, %p281
      %p283 = scmp.ne.s32.totalorder %s274, %s275
      %p284 = scmp.eq.s32.totalorder %s28, 0
      %p285 = por %p283, %p284
      %p286 = scmp.ne.s32.totalorder %s274, %s275
      %p287 = scmp.eq.s32.totalorder %s29, 1
      %p288 = por %p286, %p287
      %p290 = scmp.ne.s32.totalorder %s275, %s289
      %p291 = scmp.eq.s32.totalorder %s29, 0
      %p292 = por %p290, %p291
      %s294 = sadd.s32 %s293, 1
      %p297 = scmp.eq.s32.totalorder %s23, 1
      %p298 = scmp.ne.s32.totalorder %s293, %s295
      %p299 = scmp.eq.s32.totalorder %s23, 0
      %p300 = por %p298, %p299
      %p301 = scmp.ne.s32.totalorder %s293, %s295
      %p302 = scmp.eq.s32.totalorder %s28, 1
      %p303 = por %p301, %p302
      %p304 = scmp.ne.s32.totalorder %s295, %s296
      %p305 = scmp.eq.s32.totalorder %s28, 0
      %p306 = por %p304, %p305
      %p307 = scmp.ne.s32.totalorder %s295, %s296
      %p308 = scmp.eq.s32.totalorder %s29, 1
      %p309 = por %p307, %p308
      %p311 = scmp.ne.s32.totalorder %s296, %s310
      %p312 = scmp.eq.s32.totalorder %s29, 0
      %p313 = por %p311, %p312
      %s315 = sadd.s32 %s314, 1
      %p318 = scmp.eq.s32.totalorder %s23, 1
      %p319 = scmp.ne.s32.totalorder %s314, %s316
      %p320 = scmp.eq.s32.totalorder %s23, 0
      %p321 = por %p319, %p320
      %p322 = scmp.ne.s32.totalorder %s314, %s316
      %p323 = scmp.eq.s32.totalorder %s28, 1
      %p324 = por %p322, %p323
      %p325 = scmp.ne.s32.totalorder %s316, %s317
      %p326 = scmp.eq.s32.totalorder %s28, 0
      %p327 = por %p325, %p326
      %p328 = scmp.ne.s32.totalorder %s316, %s317
      %p329 = scmp.eq.s32.totalorder %s29, 1
      %p330 = por %p328, %p329
      %p332 = scmp.ne.s32.totalorder %s317, %s331
      %p333 = scmp.eq.s32.totalorder %s29, 0
      %p334 = por %p332, %p333
      %s335 = ssub.s32 %s23, %s30
      %p336 = scmp.eq.s32.totalorder %s335, 0
      %s338 = sadd.s32 %s337, 1
      %s339 = scalar_select %p336, %s337, %s338
      %p342 = pneg %p336
      %p343 = scmp.eq.s32.totalorder %s23, 1
      %p344 = por %p342, %p343
      %p345 = scmp.ne.s32.totalorder %s337, %s340
      %p346 = scmp.eq.s32.totalorder %s23, 0
      %p347 = por %p345, %p346
      %p348 = scmp.ne.s32.totalorder %s337, %s340
      %p349 = scmp.eq.s32.totalorder %s28, 1
      %p350 = por %p348, %p349
      %p351 = scmp.ne.s32.totalorder %s340, %s341
      %p352 = scmp.eq.s32.totalorder %s28, 0
      %p353 = por %p351, %p352
      %p354 = scmp.ne.s32.totalorder %s340, %s341
      %p355 = scmp.eq.s32.totalorder %s29, 1
      %p356 = por %p354, %p355
      %p358 = scmp.ne.s32.totalorder %s341, %s357
      %p359 = scmp.eq.s32.totalorder %s29, 0
      %p360 = por %p358, %p359
      %p361 = scmp.le.s32.totalorder 1, %s23
      %p362 = scmp.lt.s32.totalorder %s23, 3
      %p363 = pnand %p361, %p362
      %p364 = pneg %p363
      // Predicated region
      $region9: #{decoder_only_forward.1} parent=5 // pred_check
        _
      $region10: #{decoder_only_forward.1} parent=5 // pred_check_branch
        %366 = sbr.rel (%p363) target = $region12
      $region11: #{decoder_only_forward.1} parent=5 // pred_region
        %s367 = ssub.s32 %s23, 1
        // Predicated region
        $region13: #{decoder_only_forward.1} parent=11 // pred_check
          %p368 = pneg %p96
        $region14: #{decoder_only_forward.1} parent=11 // pred_check_branch
          %370 = sbr.rel (%p368) target = $region16
        $region15: #{decoder_only_forward.1} parent=11 // pred_region
          _
        $region16: #{decoder_only_forward.1} parent=11 // pred_fallthru
          _
        // Predicated region
        $region17: #{decoder_only_forward.1} parent=11 // pred_check
          %p371 = pneg %p117
        $region18: #{decoder_only_forward.1} parent=11 // pred_check_branch
          %373 = sbr.rel (%p371) target = $region20
        $region19: #{decoder_only_forward.1} parent=11 // pred_region
          _
        $region20: #{decoder_only_forward.1} parent=11 // pred_fallthru
          _
        // Predicated region
        $region21: #{decoder_only_forward.1} parent=11 // pred_check
          %p374 = pneg %p138
        $region22: #{decoder_only_forward.1} parent=11 // pred_check_branch
          %376 = sbr.rel (%p374) target = $region24
        $region23: #{decoder_only_forward.1} parent=11 // pred_region
          _
        $region24: #{decoder_only_forward.1} parent=11 // pred_fallthru
          _
        // Predicated region
        $region25: #{decoder_only_forward.1} parent=11 // pred_check
          %p377 = pneg %p159
        $region26: #{decoder_only_forward.1} parent=11 // pred_check_branch
          %379 = sbr.rel (%p377) target = $region28
        $region27: #{decoder_only_forward.1} parent=11 // pred_region
          _
        $region28: #{decoder_only_forward.1} parent=11 // pred_fallthru
          _
        // Predicated region
        $region29: #{decoder_only_forward.1} parent=11 // pred_check
          %p380 = pneg %p180
        $region30: #{decoder_only_forward.1} parent=11 // pred_check_branch
          %382 = sbr.rel (%p380) target = $region32
        $region31: #{decoder_only_forward.1} parent=11 // pred_region
          _
        $region32: #{decoder_only_forward.1} parent=11 // pred_fallthru
          _
        // Predicated region
        $region33: #{decoder_only_forward.1} parent=11 // pred_check
          %p383 = pneg %p201
        $region34: #{decoder_only_forward.1} parent=11 // pred_check_branch
          %385 = sbr.rel (%p383) target = $region36
        $region35: #{decoder_only_forward.1} parent=11 // pred_region
          _
        $region36: #{decoder_only_forward.1} parent=11 // pred_fallthru
          _
        // Predicated region
        $region37: #{decoder_only_forward.1} parent=11 // pred_check
          %p386 = pneg %p222
        $region38: #{decoder_only_forward.1} parent=11 // pred_check_branch
          %388 = sbr.rel (%p386) target = $region40
        $region39: #{decoder_only_forward.1} parent=11 // pred_region
          _
        $region40: #{decoder_only_forward.1} parent=11 // pred_fallthru
          _
        // Predicated region
        $region41: #{decoder_only_forward.1} parent=11 // pred_check
          %p389 = pneg %p243
        $region42: #{decoder_only_forward.1} parent=11 // pred_check_branch
          %391 = sbr.rel (%p389) target = $region44
        $region43: #{decoder_only_forward.1} parent=11 // pred_region
          _
        $region44: #{decoder_only_forward.1} parent=11 // pred_fallthru
          _
        // Predicated region
        $region45: #{decoder_only_forward.1} parent=11 // pred_check
          %p392 = pneg %p264
        $region46: #{decoder_only_forward.1} parent=11 // pred_check_branch
          %394 = sbr.rel (%p392) target = $region48
        $region47: #{decoder_only_forward.1} parent=11 // pred_region
          _
        $region48: #{decoder_only_forward.1} parent=11 // pred_fallthru
          _
        // Predicated region
        $region49: #{decoder_only_forward.1} parent=11 // pred_check
          %p395 = pneg %p285
        $region50: #{decoder_only_forward.1} parent=11 // pred_check_branch
          %397 = sbr.rel (%p395) target = $region52
        $region51: #{decoder_only_forward.1} parent=11 // pred_region
          _
        $region52: #{decoder_only_forward.1} parent=11 // pred_fallthru
          _
        // Predicated region
        $region53: #{decoder_only_forward.1} parent=11 // pred_check
          %p398 = pneg %p306
        $region54: #{decoder_only_forward.1} parent=11 // pred_check_branch
          %400 = sbr.rel (%p398) target = $region56
        $region55: #{decoder_only_forward.1} parent=11 // pred_region
          _
        $region56: #{decoder_only_forward.1} parent=11 // pred_fallthru
          _
        // Predicated region
        $region57: #{decoder_only_forward.1} parent=11 // pred_check
          %p401 = pneg %p327
        $region58: #{decoder_only_forward.1} parent=11 // pred_check_branch
          %403 = sbr.rel (%p401) target = $region60
        $region59: #{decoder_only_forward.1} parent=11 // pred_region
          _
        $region60: #{decoder_only_forward.1} parent=11 // pred_fallthru
          _
      $region12: #{decoder_only_forward.1} parent=5 // pred_fallthru
        _
      %p404 = scmp.lt.s32.totalorder %s23, 2
      // Predicated region
      $region61: #{decoder_only_forward.1} parent=5 // pred_check
        %p405 = pneg %p404
      $region62: #{decoder_only_forward.1} parent=5 // pred_check_branch
        %407 = sbr.rel (%p405) target = $region64
      $region63: #{decoder_only_forward.1} parent=5 // pred_region
        // Predicated region
        $region65: #{decoder_only_forward.1} parent=63 // pred_check
          %p408 = pneg %p43
        $region66: #{decoder_only_forward.1} parent=63 // pred_check_branch
          %410 = sbr.rel (%p408) target = $region68
        $region67: #{decoder_only_forward.1} parent=63 // pred_region
          %p411 = scmp.lt.s32.totalorder %s23, 1
          %s412 = scalar_select %p411, %s23, 1
          %s413 = smul.addr %s412, 8
          %s414 = scalar_lea.vmem %s0, %s413
        $region68: #{decoder_only_forward.1} parent=63 // pred_fallthru
          _
        // Predicated region
        $region69: #{decoder_only_forward.1} parent=63 // pred_check
          %p415 = pneg %p69
        $region70: #{decoder_only_forward.1} parent=63 // pred_check_branch
          %417 = sbr.rel (%p415) target = $region72
        $region71: #{decoder_only_forward.1} parent=63 // pred_region
          %p418 = scmp.lt.s32.totalorder %s23, 1
          %s419 = scalar_select %p418, %s23, 1
          %s420 = scalar_lea.vmem %s1, %s419
        $region72: #{decoder_only_forward.1} parent=63 // pred_fallthru
          _
      $region64: #{decoder_only_forward.1} parent=5 // pred_fallthru
        _
      %p421 = scmp.le.s32.totalorder 1, %s23
      %p422 = scmp.lt.s32.totalorder %s23, 3
      %p423 = pnand %p421, %p422
      %p424 = pneg %p423
      // Predicated region
      $region73: #{decoder_only_forward.1} parent=5 // pred_check
        _
      $region74: #{decoder_only_forward.1} parent=5 // pred_check_branch
        %426 = sbr.rel (%p423) target = $region76
      $region75: #{decoder_only_forward.1} parent=5 // pred_region
        %s427 = ssub.s32 %s23, 1
        %p428 = scmp.lt.s32.totalorder %s28, 1
        %s429 = scalar_select %p428, %s28, 1
        %s430 = smul.addr %s429, 8
        %s431 = scalar_lea.vmem %s0, %s430
        %p432 = pneg %p49
        %p433 = pneg %p46
        %p434 = scmp.lt.s32.totalorder %s28, 1
        %s435 = scalar_select %p434, %s28, 1
        %s436 = scalar_lea.vmem %s1, %s435
        %p437 = pneg %p75
        %p438 = pneg %p72
        %p439 = pneg %p96
        %p440 = pneg %p93
        %p441 = pneg %p117
        %p442 = pneg %p114
        %p443 = pneg %p138
        %p444 = pneg %p135
        %p445 = pneg %p159
        %p446 = pneg %p156
        %p447 = pneg %p180
        %p448 = pneg %p177
        %p449 = pneg %p201
        %p450 = pneg %p198
        %p451 = pneg %p222
        %p452 = pneg %p219
        %p453 = pneg %p243
        %p454 = pneg %p240
        %p455 = pneg %p264
        %p456 = pneg %p261
        %p457 = pneg %p285
        %p458 = pneg %p282
        %p459 = pneg %p306
        %p460 = pneg %p303
        %p461 = pneg %p327
        %p462 = pneg %p324
        %p463 = pneg %p353
        %p464 = pneg %p350
        %s465 = sand.u32 %s340, 1
        %s466 = scalar_lea.sflag [#allocation3], %s465
        %s467 = sand.u32 %s340, 1
        %s468 = smul.addr %s467, 8
        %s469 = scalar_lea.vmem [#allocation2], %s468
        %p470 = scmp.lt.s32.totalorder %s28, 1
        %s471 = scalar_select %p470, %s28, 1
        %s472 = smul.addr %s471, 8
        %s473 = scalar_lea.vmem %s0, %s472
        %p474 = scmp.lt.s32.totalorder %s28, 1
        %s475 = scalar_select %p474, %s28, 1
        %s476 = scalar_lea.vmem %s1, %s475
        %v478 = vld [vmem:[%s473] sm:$0xff]
        %v479 = vlaneseq
        %v480 = vshrl.u32 %v479, 7
        %v481 = vlaneseq
        %v482 = vand.u32 %v481, 127
        %vm483 = vcmp.gt.s32.totalorder %v482, %v480
        %v484 = vsel %vm483, -1e+30, 0.0
        %v485 = vld [vmem:[%s476] sm:$0x1]
        %v487 = vlaneseq
        %v488 = vshrl.u32 %v487, 7
        %v489 = vsub.s32 0, %v488
        %v490 = vrot.slane %v485, %v489
        %v492 = vadd.f32 %v484, %v490
        %v493 = vpack.c.bf16 %v478, %v478
        %v494 = vld [vmem:[%s2] sm:$0xf]
        %v495 = vld [vmem:[%s2 + $0x4] sm:$0xf]
        %v496 = vld [vmem:[%s2 + $0x8] sm:$0xf]
        %v497 = vld [vmem:[%s2 + $0xc] sm:$0xf]
        %v498 = vld [vmem:[%s3] sm:$0x1]
        %v500 = vlaneseq
        %v501 = vshrl.u32 %v500, 7
        %v502 = vsub.s32 0, %v501
        %v503 = vrot.slane %v498, %v502
        %v509 = vunpack.c.l.b16 %v494
        %v510 = vunpack.c.l.b16 %v495
        %v511 = vunpack.c.l.b16 %v496
        %v512 = vunpack.c.l.b16 %v497
        %v513 = vpack.c.b16 %v510, %v509
        %v514 = vpack.c.b16 %v512, %v511
        %vm517 = vcmask 261120
        %v519 = vsel %vm517, %v493, 0
        %521 = vmatprep.subr.bf16.mxu0 0
        %522 = vmatpush1.bf16.msra.mxu0 0
        %523 = vmatprep.subr.bf16.mxu0 0
        %524 = vmatpush1.bf16.msra.mxu0 0
        %525 = vmatprep.subr.bf16.mxu0 0
        %526 = vmatpush1.bf16.msra.mxu0 0
        %527 = vmatprep.subr.bf16.mxu0 0
        %528 = vmatpush1.bf16.msra.mxu0 0
        %529 = vmatprep.subr.bf16.mxu0 0
        %530 = vmatpush1.bf16.msra.mxu0 0
        %531 = vmatprep.subr.bf16.mxu0 0
        %532 = vmatpush1.bf16.msra.mxu0 0
        %533 = vmatprep.subr.bf16.mxu0 0
        %534 = vmatpush1.bf16.msra.mxu0 %v514
        %535 = vmatprep.subr.bf16.mxu0 0
        %536 = vmatpush1.bf16.msra.mxu0 %v513
        %537 = vmatprep.subr.bf16.mxu0 0
        %538 = vmatpush2.bf16.msra.mxu0 0
        %539 = vmatprep.subr.bf16.mxu0 0
        %540 = vmatpush2.bf16.msra.mxu0 0
        %541 = vmatprep.subr.bf16.mxu0 0
        %542 = vmatpush2.bf16.msra.mxu0 0
        %543 = vmatprep.subr.bf16.mxu0 0
        %544 = vmatpush2.bf16.msra.mxu0 0
        %545 = vmatprep.subr.bf16.mxu0 0
        %546 = vmatpush2.bf16.msra.mxu0 0
        %547 = vmatprep.subr.bf16.mxu0 0
        %548 = vmatpush2.bf16.msra.mxu0 0
        %549 = vmatprep.subr.bf16.mxu0 0
        %550 = vmatpush2.bf16.msra.mxu0 0
        %551 = vmatprep.subr.bf16.mxu0 0
        %552 = vmatpush2.bf16.msra.mxu0 0
        %553 = vmatprep.mubr.bf16.mxu0 0
        %554 = vmatmul.mubr.bf16.gmra.mxu0 %v519
        %v555 = vpop.f32.mrf.mxu0
        %v556 = vadd.f32 %v503, %v555
        %v557 = vpop.f32.mrf.mxu0
        %v558 = vpop.f32.mrf.mxu0
        %v559 = vpop.f32.mrf.mxu0
        %560 = vdwg.mxu0
        %562 = vrot.lane.b32.xlu0 %v556, 120
        %v563 = vpop.permute.xlu0 %562
        %565 = vrot.lane.b32.xlu0 %v556, 112
        %v566 = vpop.permute.xlu0 %565
        %568 = vrot.lane.b32.xlu0 %v556, 104
        %v569 = vpop.permute.xlu0 %568
        %v571 = vpack.c.bf16 %v556, %v556
        %v572 = vpack.c.bf16 %v563, %v563
        %v573 = vpack.c.bf16 %v566, %v566
        %v574 = vpack.c.bf16 %v569, %v569
        %576 = vrot.lane.b32.xlu0 %v571, 96
        %v577 = vpop.permute.xlu0 %576
        %vm578 = vcmask 64512
        %v580 = vsel %vm578, %v571, 0
        %v583 = vsel %vm578, %v577, 0
        %585 = vmatprep.subr.bf16.mxu0 0
        %586 = vmatpush1.bf16.xpose.msra.mxu0 0
        %587 = vmatprep.subr.bf16.mxu0 0
        %588 = vmatpush1.bf16.xpose.msra.mxu0 0
        %589 = vmatprep.subr.bf16.mxu0 0
        %590 = vmatpush1.bf16.xpose.msra.mxu0 0
        %591 = vmatprep.subr.bf16.mxu0 0
        %592 = vmatpush1.bf16.xpose.msra.mxu0 0
        %593 = vmatprep.subr.bf16.mxu0 0
        %594 = vmatpush1.bf16.xpose.msra.mxu0 0
        %595 = vmatprep.subr.bf16.mxu0 0
        %596 = vmatpush1.bf16.xpose.msra.mxu0 0
        %597 = vmatprep.subr.bf16.mxu0 0
        %598 = vmatpush1.bf16.xpose.msra.mxu0 0
        %599 = vmatprep.subr.bf16.mxu0 0
        %600 = vmatpush1.bf16.xpose.msra.mxu0 %v583
        %601 = vmatprep.subr.bf16.mxu0 0
        %602 = vmatpush2.bf16.xpose.msra.mxu0 0
        %603 = vmatprep.subr.bf16.mxu0 0
        %604 = vmatpush2.bf16.xpose.msra.mxu0 0
        %605 = vmatprep.subr.bf16.mxu0 0
        %606 = vmatpush2.bf16.xpose.msra.mxu0 0
        %607 = vmatprep.subr.bf16.mxu0 0
        %608 = vmatpush2.bf16.xpose.msra.mxu0 0
        %609 = vmatprep.subr.bf16.mxu0 0
        %610 = vmatpush2.bf16.xpose.msra.mxu0 0
        %611 = vmatprep.subr.bf16.mxu0 0
        %612 = vmatpush2.bf16.xpose.msra.mxu0 0
        %613 = vmatprep.subr.bf16.mxu0 0
        %614 = vmatpush2.bf16.xpose.msra.mxu0 0
        %615 = vmatprep.subr.bf16.mxu0 0
        %616 = vmatpush2.bf16.xpose.msra.mxu0 0
        %617 = vmatprep.mubr.bf16.mxu0 0
        %618 = vmatmul.mubr.bf16.gmra.mxu0 %v580
        %v619 = vpop.f32.mrf.mxu0
        %v620 = vadd.f32 %v492, %v619
        %v621 = vpop.f32.mrf.mxu0
        %v622 = vpop.f32.mrf.mxu0
        %v623 = vpop.f32.mrf.mxu0
        %624 = vdwg.mxu0
        %626 = vrot.lane.b32.xlu0 %v572, 96
        %v627 = vpop.permute.xlu0 %626
        %v629 = vsel %vm578, %v572, 0
        %v632 = vsel %vm578, %v627, 0
        %634 = vmatprep.subr.bf16.mxu0 0
        %635 = vmatpush1.bf16.xpose.msra.mxu0 0
        %636 = vmatprep.subr.bf16.mxu0 0
        %637 = vmatpush1.bf16.xpose.msra.mxu0 0
        %638 = vmatprep.subr.bf16.mxu0 0
        %639 = vmatpush1.bf16.xpose.msra.mxu0 0
        %640 = vmatprep.subr.bf16.mxu0 0
        %641 = vmatpush1.bf16.xpose.msra.mxu0 0
        %642 = vmatprep.subr.bf16.mxu0 0
        %643 = vmatpush1.bf16.xpose.msra.mxu0 0
        %644 = vmatprep.subr.bf16.mxu0 0
        %645 = vmatpush1.bf16.xpose.msra.mxu0 0
        %646 = vmatprep.subr.bf16.mxu0 0
        %647 = vmatpush1.bf16.xpose.msra.mxu0 0
        %648 = vmatprep.subr.bf16.mxu0 0
        %649 = vmatpush1.bf16.xpose.msra.mxu0 %v632
        %650 = vmatprep.subr.bf16.mxu0 0
        %651 = vmatpush2.bf16.xpose.msra.mxu0 0
        %652 = vmatprep.subr.bf16.mxu0 0
        %653 = vmatpush2.bf16.xpose.msra.mxu0 0
        %654 = vmatprep.subr.bf16.mxu0 0
        %655 = vmatpush2.bf16.xpose.msra.mxu0 0
        %656 = vmatprep.subr.bf16.mxu0 0
        %657 = vmatpush2.bf16.xpose.msra.mxu0 0
        %658 = vmatprep.subr.bf16.mxu0 0
        %659 = vmatpush2.bf16.xpose.msra.mxu0 0
        %660 = vmatprep.subr.bf16.mxu0 0
        %661 = vmatpush2.bf16.xpose.msra.mxu0 0
        %662 = vmatprep.subr.bf16.mxu0 0
        %663 = vmatpush2.bf16.xpose.msra.mxu0 0
        %664 = vmatprep.subr.bf16.mxu0 0
        %665 = vmatpush2.bf16.xpose.msra.mxu0 0
        %666 = vmatprep.mubr.bf16.mxu0 0
        %667 = vmatmul.mubr.bf16.gmra.mxu0 %v629
        %v668 = vpop.f32.mrf.mxu0
        %v669 = vadd.f32 %v492, %v668
        %v670 = vpop.f32.mrf.mxu0
        %v671 = vpop.f32.mrf.mxu0
        %v672 = vpop.f32.mrf.mxu0
        %673 = vdwg.mxu0
        %675 = vrot.lane.b32.xlu0 %v573, 96
        %v676 = vpop.permute.xlu0 %675
        %v678 = vsel %vm578, %v573, 0
        %v681 = vsel %vm578, %v676, 0
        %683 = vmatprep.subr.bf16.mxu0 0
        %684 = vmatpush1.bf16.xpose.msra.mxu0 0
        %685 = vmatprep.subr.bf16.mxu0 0
        %686 = vmatpush1.bf16.xpose.msra.mxu0 0
        %687 = vmatprep.subr.bf16.mxu0 0
        %688 = vmatpush1.bf16.xpose.msra.mxu0 0
        %689 = vmatprep.subr.bf16.mxu0 0
        %690 = vmatpush1.bf16.xpose.msra.mxu0 0
        %691 = vmatprep.subr.bf16.mxu0 0
        %692 = vmatpush1.bf16.xpose.msra.mxu0 0
        %693 = vmatprep.subr.bf16.mxu0 0
        %694 = vmatpush1.bf16.xpose.msra.mxu0 0
        %695 = vmatprep.subr.bf16.mxu0 0
        %696 = vmatpush1.bf16.xpose.msra.mxu0 0
        %697 = vmatprep.subr.bf16.mxu0 0
        %698 = vmatpush1.bf16.xpose.msra.mxu0 %v681
        %699 = vmatprep.subr.bf16.mxu0 0
        %700 = vmatpush2.bf16.xpose.msra.mxu0 0
        %701 = vmatprep.subr.bf16.mxu0 0
        %702 = vmatpush2.bf16.xpose.msra.mxu0 0
        %703 = vmatprep.subr.bf16.mxu0 0
        %704 = vmatpush2.bf16.xpose.msra.mxu0 0
        %705 = vmatprep.subr.bf16.mxu0 0
        %706 = vmatpush2.bf16.xpose.msra.mxu0 0
        %707 = vmatprep.subr.bf16.mxu0 0
        %708 = vmatpush2.bf16.xpose.msra.mxu0 0
        %709 = vmatprep.subr.bf16.mxu0 0
        %710 = vmatpush2.bf16.xpose.msra.mxu0 0
        %711 = vmatprep.subr.bf16.mxu0 0
        %712 = vmatpush2.bf16.xpose.msra.mxu0 0
        %713 = vmatprep.subr.bf16.mxu0 0
        %714 = vmatpush2.bf16.xpose.msra.mxu0 0
        %715 = vmatprep.mubr.bf16.mxu0 0
        %716 = vmatmul.mubr.bf16.gmra.mxu0 %v678
        %v717 = vpop.f32.mrf.mxu0
        %v718 = vadd.f32 %v492, %v717
        %v719 = vpop.f32.mrf.mxu0
        %v720 = vpop.f32.mrf.mxu0
        %v721 = vpop.f32.mrf.mxu0
        %722 = vdwg.mxu0
        %724 = vrot.lane.b32.xlu0 %v574, 96
        %v725 = vpop.permute.xlu0 %724
        %v727 = vsel %vm578, %v574, 0
        %v730 = vsel %vm578, %v725, 0
        %732 = vmatprep.subr.bf16.mxu0 0
        %733 = vmatpush1.bf16.xpose.msra.mxu0 0
        %734 = vmatprep.subr.bf16.mxu0 0
        %735 = vmatpush1.bf16.xpose.msra.mxu0 0
        %736 = vmatprep.subr.bf16.mxu0 0
        %737 = vmatpush1.bf16.xpose.msra.mxu0 0
        %738 = vmatprep.subr.bf16.mxu0 0
        %739 = vmatpush1.bf16.xpose.msra.mxu0 0
        %740 = vmatprep.subr.bf16.mxu0 0
        %741 = vmatpush1.bf16.xpose.msra.mxu0 0
        %742 = vmatprep.subr.bf16.mxu0 0
        %743 = vmatpush1.bf16.xpose.msra.mxu0 0
        %744 = vmatprep.subr.bf16.mxu0 0
        %745 = vmatpush1.bf16.xpose.msra.mxu0 0
        %746 = vmatprep.subr.bf16.mxu0 0
        %747 = vmatpush1.bf16.xpose.msra.mxu0 %v730
        %748 = vmatprep.subr.bf16.mxu0 0
        %749 = vmatpush2.bf16.xpose.msra.mxu0 0
        %750 = vmatprep.subr.bf16.mxu0 0
        %751 = vmatpush2.bf16.xpose.msra.mxu0 0
        %752 = vmatprep.subr.bf16.mxu0 0
        %753 = vmatpush2.bf16.xpose.msra.mxu0 0
        %754 = vmatprep.subr.bf16.mxu0 0
        %755 = vmatpush2.bf16.xpose.msra.mxu0 0
        %756 = vmatprep.subr.bf16.mxu0 0
        %757 = vmatpush2.bf16.xpose.msra.mxu0 0
        %758 = vmatprep.subr.bf16.mxu0 0
        %759 = vmatpush2.bf16.xpose.msra.mxu0 0
        %760 = vmatprep.subr.bf16.mxu0 0
        %761 = vmatpush2.bf16.xpose.msra.mxu0 0
        %762 = vmatprep.subr.bf16.mxu0 0
        %763 = vmatpush2.bf16.xpose.msra.mxu0 0
        %764 = vmatprep.mubr.bf16.mxu0 0
        %765 = vmatmul.mubr.bf16.gmra.mxu0 %v727
        %v766 = vpop.f32.mrf.mxu0
        %v767 = vadd.f32 %v492, %v766
        %v768 = vpop.f32.mrf.mxu0
        %v769 = vpop.f32.mrf.mxu0
        %v770 = vpop.f32.mrf.mxu0
        %771 = vdwg.mxu0
        %v772 = vsel %vm578, %v620, -inf
        %773 = vmax.xlane.f32.xlu0 %v772
        %v774 = vpop.xlane.xlu0 %773
        %v775 = vsel %vm578, %v669, -inf
        %776 = vmax.xlane.f32.xlu0 %v775
        %v777 = vpop.xlane.xlu0 %776
        %v778 = vsel %vm578, %v718, -inf
        %779 = vmax.xlane.f32.xlu0 %v778
        %v780 = vpop.xlane.xlu0 %779
        %v781 = vsel %vm578, %v767, -inf
        %782 = vmax.xlane.f32.xlu0 %v781
        %v783 = vpop.xlane.xlu0 %782
        %v784 = vsub.f32 %v620, %v774
        %v785 = vsub.f32 %v669, %v777
        %v786 = vsub.f32 %v718, %v780
        %v787 = vsub.f32 %v767, %v783
        %v788 = vmul.f32 %v784, 1.442695
        %v789 = vpow.pop %v788
        %v790 = vmul.f32 %v785, 1.442695
        %v791 = vpow.pop %v790
        %v792 = vmul.f32 %v786, 1.442695
        %v793 = vpow.pop %v792
        %v794 = vmul.f32 %v787, 1.442695
        %v795 = vpow.pop %v794
        %v796 = vsel %vm578, %v789, 0.0
        %797 = vadd.xlane.f32.xlu0 %v796
        %v798 = vpop.xlane.xlu0 %797
        %v799 = vsel %vm578, %v791, 0.0
        %800 = vadd.xlane.f32.xlu0 %v799
        %v801 = vpop.xlane.xlu0 %800
        %v802 = vsel %vm578, %v793, 0.0
        %803 = vadd.xlane.f32.xlu0 %v802
        %v804 = vpop.xlane.xlu0 %803
        %v805 = vsel %vm578, %v795, 0.0
        %806 = vadd.xlane.f32.xlu0 %v805
        %v807 = vpop.xlane.xlu0 %806
        %v808 = vrcp.pop %v798
        %v809 = vrcp.pop %v801
        %v810 = vrcp.pop %v804
        %v811 = vrcp.pop %v807
        %v812 = vmul.f32 %v789, %v808
        %v813 = vmul.f32 %v791, %v809
        %v814 = vmul.f32 %v793, %v810
        %v815 = vmul.f32 %v795, %v811
        %v816 = vpack.c.bf16 %v812, %v812
        %v817 = vpack.c.bf16 %v813, %v813
        %v818 = vpack.c.bf16 %v814, %v814
        %v819 = vpack.c.bf16 %v815, %v815
        %820 = vrot.lane.b32.xlu0 %v571, 64
        %v821 = vpop.permute.xlu0 %820
        %v823 = vsel %vm578, %v816, 0
        %vm825 = vcmask 1043456
        %v827 = vsel %vm825, %v821, 0
        %829 = vmatprep.subr.bf16.mxu0 0
        %830 = vmatpush1.bf16.msra.mxu0 0
        %831 = vmatprep.subr.bf16.mxu0 0
        %832 = vmatpush1.bf16.msra.mxu0 0
        %833 = vmatprep.subr.bf16.mxu0 0
        %834 = vmatpush1.bf16.msra.mxu0 0
        %835 = vmatprep.subr.bf16.mxu0 0
        %836 = vmatpush1.bf16.msra.mxu0 0
        %837 = vmatprep.subr.bf16.mxu0 0
        %838 = vmatpush1.bf16.msra.mxu0 0
        %839 = vmatprep.subr.bf16.mxu0 0
        %840 = vmatpush1.bf16.msra.mxu0 0
        %841 = vmatprep.subr.bf16.mxu0 0
        %842 = vmatpush1.bf16.msra.mxu0 0
        %843 = vmatprep.subr.bf16.mxu0 0
        %844 = vmatpush1.bf16.msra.mxu0 %v827
        %845 = vmatprep.subr.bf16.mxu0 0
        %846 = vmatpush2.bf16.msra.mxu0 0
        %847 = vmatprep.subr.bf16.mxu0 0
        %848 = vmatpush2.bf16.msra.mxu0 0
        %849 = vmatprep.subr.bf16.mxu0 0
        %850 = vmatpush2.bf16.msra.mxu0 0
        %851 = vmatprep.subr.bf16.mxu0 0
        %852 = vmatpush2.bf16.msra.mxu0 0
        %853 = vmatprep.subr.bf16.mxu0 0
        %854 = vmatpush2.bf16.msra.mxu0 0
        %855 = vmatprep.subr.bf16.mxu0 0
        %856 = vmatpush2.bf16.msra.mxu0 0
        %857 = vmatprep.subr.bf16.mxu0 0
        %858 = vmatpush2.bf16.msra.mxu0 0
        %859 = vmatprep.subr.bf16.mxu0 0
        %860 = vmatpush2.bf16.msra.mxu0 0
        %861 = vmatprep.mubr.bf16.mxu0 0
        %862 = vmatmul.mubr.bf16.gmra.mxu0 %v823
        %v863 = vpop.f32.mrf.mxu0
        %v864 = vadd.f32 0.0, %v863
        %v865 = vpop.f32.mrf.mxu0
        %v866 = vpop.f32.mrf.mxu0
        %v867 = vpop.f32.mrf.mxu0
        %868 = vdwg.mxu0
        %869 = vrot.lane.b32.xlu0 %v572, 64
        %v870 = vpop.permute.xlu0 %869
        %v872 = vsel %vm578, %v817, 0
        %v875 = vsel %vm825, %v870, 0
        %877 = vmatprep.subr.bf16.mxu0 0
        %878 = vmatpush1.bf16.msra.mxu0 0
        %879 = vmatprep.subr.bf16.mxu0 0
        %880 = vmatpush1.bf16.msra.mxu0 0
        %881 = vmatprep.subr.bf16.mxu0 0
        %882 = vmatpush1.bf16.msra.mxu0 0
        %883 = vmatprep.subr.bf16.mxu0 0
        %884 = vmatpush1.bf16.msra.mxu0 0
        %885 = vmatprep.subr.bf16.mxu0 0
        %886 = vmatpush1.bf16.msra.mxu0 0
        %887 = vmatprep.subr.bf16.mxu0 0
        %888 = vmatpush1.bf16.msra.mxu0 0
        %889 = vmatprep.subr.bf16.mxu0 0
        %890 = vmatpush1.bf16.msra.mxu0 0
        %891 = vmatprep.subr.bf16.mxu0 0
        %892 = vmatpush1.bf16.msra.mxu0 %v875
        %893 = vmatprep.subr.bf16.mxu0 0
        %894 = vmatpush2.bf16.msra.mxu0 0
        %895 = vmatprep.subr.bf16.mxu0 0
        %896 = vmatpush2.bf16.msra.mxu0 0
        %897 = vmatprep.subr.bf16.mxu0 0
        %898 = vmatpush2.bf16.msra.mxu0 0
        %899 = vmatprep.subr.bf16.mxu0 0
        %900 = vmatpush2.bf16.msra.mxu0 0
        %901 = vmatprep.subr.bf16.mxu0 0
        %902 = vmatpush2.bf16.msra.mxu0 0
        %903 = vmatprep.subr.bf16.mxu0 0
        %904 = vmatpush2.bf16.msra.mxu0 0
        %905 = vmatprep.subr.bf16.mxu0 0
        %906 = vmatpush2.bf16.msra.mxu0 0
        %907 = vmatprep.subr.bf16.mxu0 0
        %908 = vmatpush2.bf16.msra.mxu0 0
        %909 = vmatprep.mubr.bf16.mxu0 0
        %910 = vmatmul.mubr.bf16.gmra.mxu0 %v872
        %v911 = vpop.f32.mrf.mxu0
        %v912 = vadd.f32 0.0, %v911
        %v913 = vpop.f32.mrf.mxu0
        %v914 = vpop.f32.mrf.mxu0
        %v915 = vpop.f32.mrf.mxu0
        %916 = vdwg.mxu0
        %917 = vrot.lane.b32.xlu0 %v573, 64
        %v918 = vpop.permute.xlu0 %917
        %v920 = vsel %vm578, %v818, 0
        %v923 = vsel %vm825, %v918, 0
        %925 = vmatprep.subr.bf16.mxu0 0
        %926 = vmatpush1.bf16.msra.mxu0 0
        %927 = vmatprep.subr.bf16.mxu0 0
        %928 = vmatpush1.bf16.msra.mxu0 0
        %929 = vmatprep.subr.bf16.mxu0 0
        %930 = vmatpush1.bf16.msra.mxu0 0
        %931 = vmatprep.subr.bf16.mxu0 0
        %932 = vmatpush1.bf16.msra.mxu0 0
        %933 = vmatprep.subr.bf16.mxu0 0
        %934 = vmatpush1.bf16.msra.mxu0 0
        %935 = vmatprep.subr.bf16.mxu0 0
        %936 = vmatpush1.bf16.msra.mxu0 0
        %937 = vmatprep.subr.bf16.mxu0 0
        %938 = vmatpush1.bf16.msra.mxu0 0
        %939 = vmatprep.subr.bf16.mxu0 0
        %940 = vmatpush1.bf16.msra.mxu0 %v923
        %941 = vmatprep.subr.bf16.mxu0 0
        %942 = vmatpush2.bf16.msra.mxu0 0
        %943 = vmatprep.subr.bf16.mxu0 0
        %944 = vmatpush2.bf16.msra.mxu0 0
        %945 = vmatprep.subr.bf16.mxu0 0
        %946 = vmatpush2.bf16.msra.mxu0 0
        %947 = vmatprep.subr.bf16.mxu0 0
        %948 = vmatpush2.bf16.msra.mxu0 0
        %949 = vmatprep.subr.bf16.mxu0 0
        %950 = vmatpush2.bf16.msra.mxu0 0
        %951 = vmatprep.subr.bf16.mxu0 0
        %952 = vmatpush2.bf16.msra.mxu0 0
        %953 = vmatprep.subr.bf16.mxu0 0
        %954 = vmatpush2.bf16.msra.mxu0 0
        %955 = vmatprep.subr.bf16.mxu0 0
        %956 = vmatpush2.bf16.msra.mxu0 0
        %957 = vmatprep.mubr.bf16.mxu0 0
        %958 = vmatmul.mubr.bf16.gmra.mxu0 %v920
        %v959 = vpop.f32.mrf.mxu0
        %v960 = vadd.f32 0.0, %v959
        %v961 = vpop.f32.mrf.mxu0
        %v962 = vpop.f32.mrf.mxu0
        %v963 = vpop.f32.mrf.mxu0
        %964 = vdwg.mxu0
        %965 = vrot.lane.b32.xlu0 %v574, 64
        %v966 = vpop.permute.xlu0 %965
        %v968 = vsel %vm578, %v819, 0
        %v971 = vsel %vm825, %v966, 0
        %973 = vmatprep.subr.bf16.mxu0 0
        %974 = vmatpush1.bf16.msra.mxu0 0
        %975 = vmatprep.subr.bf16.mxu0 0
        %976 = vmatpush1.bf16.msra.mxu0 0
        %977 = vmatprep.subr.bf16.mxu0 0
        %978 = vmatpush1.bf16.msra.mxu0 0
        %979 = vmatprep.subr.bf16.mxu0 0
        %980 = vmatpush1.bf16.msra.mxu0 0
        %981 = vmatprep.subr.bf16.mxu0 0
        %982 = vmatpush1.bf16.msra.mxu0 0
        %983 = vmatprep.subr.bf16.mxu0 0
        %984 = vmatpush1.bf16.msra.mxu0 0
        %985 = vmatprep.subr.bf16.mxu0 0
        %986 = vmatpush1.bf16.msra.mxu0 0
        %987 = vmatprep.subr.bf16.mxu0 0
        %988 = vmatpush1.bf16.msra.mxu0 %v971
        %989 = vmatprep.subr.bf16.mxu0 0
        %990 = vmatpush2.bf16.msra.mxu0 0
        %991 = vmatprep.subr.bf16.mxu0 0
        %992 = vmatpush2.bf16.msra.mxu0 0
        %993 = vmatprep.subr.bf16.mxu0 0
        %994 = vmatpush2.bf16.msra.mxu0 0
        %995 = vmatprep.subr.bf16.mxu0 0
        %996 = vmatpush2.bf16.msra.mxu0 0
        %997 = vmatprep.subr.bf16.mxu0 0
        %998 = vmatpush2.bf16.msra.mxu0 0
        %999 = vmatprep.subr.bf16.mxu0 0
        %1000 = vmatpush2.bf16.msra.mxu0 0
        %1001 = vmatprep.subr.bf16.mxu0 0
        %1002 = vmatpush2.bf16.msra.mxu0 0
        %1003 = vmatprep.subr.bf16.mxu0 0
        %1004 = vmatpush2.bf16.msra.mxu0 0
        %1005 = vmatprep.mubr.bf16.mxu0 0
        %1006 = vmatmul.mubr.bf16.gmra.mxu0 %v968
        %v1007 = vpop.f32.mrf.mxu0
        %v1008 = vadd.f32 0.0, %v1007
        %v1009 = vpop.f32.mrf.mxu0
        %v1010 = vpop.f32.mrf.mxu0
        %v1011 = vpop.f32.mrf.mxu0
        %1012 = vdwg.mxu0
        %1014 = vrot.lane.b32.xlu0 %v912, 8
        %v1015 = vpop.permute.xlu0 %1014
        %1018 = vrot.lane.b32.xlu0 %v960, 16
        %v1019 = vpop.permute.xlu0 %1018
        %1022 = vrot.lane.b32.xlu0 %v1008, 24
        %v1023 = vpop.permute.xlu0 %1022
        %v1025 = vsel %vm578, %v864, %v1015
        %vm1026 = vcmask 130048
        %v1027 = vsel %vm1026, %v1025, %v1019
        %vm1028 = vcmask 195584
        %v1029 = vsel %vm1028, %v1027, %v1023
        %v1030 = vpack.c.bf16 %v1029, %v1029
        %v1031 = vld [vmem:[%s4] sm:$0xf]
        %v1032 = vld [vmem:[%s4 + $0x4] sm:$0xf]
        %v1033 = vld [vmem:[%s4 + $0x8] sm:$0xf]
        %v1034 = vld [vmem:[%s4 + $0xc] sm:$0xf]
        %v1035 = vld [vmem:[%s5] sm:$0x1]
        %v1037 = vlaneseq
        %v1038 = vshrl.u32 %v1037, 7
        %v1039 = vsub.s32 0, %v1038
        %v1040 = vrot.slane %v1035, %v1039
        %v1046 = vunpack.c.l.b16 %v1031
        %v1047 = vunpack.c.l.b16 %v1032
        %v1048 = vunpack.c.l.b16 %v1033
        %v1049 = vunpack.c.l.b16 %v1034
        %v1050 = vpack.c.b16 %v1047, %v1046
        %v1051 = vpack.c.b16 %v1049, %v1048
        %v1055 = vsel %vm517, %v1030, 0
        %1057 = vmatprep.subr.bf16.mxu0 0
        %1058 = vmatpush1.bf16.msra.mxu0 0
        %1059 = vmatprep.subr.bf16.mxu0 0
        %1060 = vmatpush1.bf16.msra.mxu0 0
        %1061 = vmatprep.subr.bf16.mxu0 0
        %1062 = vmatpush1.bf16.msra.mxu0 0
        %1063 = vmatprep.subr.bf16.mxu0 0
        %1064 = vmatpush1.bf16.msra.mxu0 0
        %1065 = vmatprep.subr.bf16.mxu0 0
        %1066 = vmatpush1.bf16.msra.mxu0 0
        %1067 = vmatprep.subr.bf16.mxu0 0
        %1068 = vmatpush1.bf16.msra.mxu0 0
        %1069 = vmatprep.subr.bf16.mxu0 0
        %1070 = vmatpush1.bf16.msra.mxu0 %v1051
        %1071 = vmatprep.subr.bf16.mxu0 0
        %1072 = vmatpush1.bf16.msra.mxu0 %v1050
        %1073 = vmatprep.subr.bf16.mxu0 0
        %1074 = vmatpush2.bf16.msra.mxu0 0
        %1075 = vmatprep.subr.bf16.mxu0 0
        %1076 = vmatpush2.bf16.msra.mxu0 0
        %1077 = vmatprep.subr.bf16.mxu0 0
        %1078 = vmatpush2.bf16.msra.mxu0 0
        %1079 = vmatprep.subr.bf16.mxu0 0
        %1080 = vmatpush2.bf16.msra.mxu0 0
        %1081 = vmatprep.subr.bf16.mxu0 0
        %1082 = vmatpush2.bf16.msra.mxu0 0
        %1083 = vmatprep.subr.bf16.mxu0 0
        %1084 = vmatpush2.bf16.msra.mxu0 0
        %1085 = vmatprep.subr.bf16.mxu0 0
        %1086 = vmatpush2.bf16.msra.mxu0 0
        %1087 = vmatprep.subr.bf16.mxu0 0
        %1088 = vmatpush2.bf16.msra.mxu0 0
        %1089 = vmatprep.mubr.bf16.mxu0 0
        %1090 = vmatmul.mubr.bf16.gmra.mxu0 %v1055
        %v1091 = vpop.f32.mrf.mxu0
        %v1092 = vadd.f32 %v1040, %v1091
        %v1093 = vpop.f32.mrf.mxu0
        %v1094 = vpop.f32.mrf.mxu0
        %v1095 = vpop.f32.mrf.mxu0
        %1096 = vdwg.mxu0
        %v1097 = vadd.f32 %v478, %v1092
        %v1098 = vld [vmem:[%s6] sm:$0x1]
        %v1099 = vld [vmem:[%s7] sm:$0x1]
        %v1100 = vsel %vm517, %v1097, 0.0
        %1101 = vadd.xlane.f32.xlu0 %v1100
        %v1102 = vpop.xlane.xlu0 %1101
        %v1103 = vrcp.pop 32.0
        %v1104 = vmul.f32 %v1102, %v1103
        %v1105 = vsub.f32 %v1097, %v1104
        %v1106 = vmul.f32 %v1105, %v1105
        %v1107 = vsel %vm517, %v1106, 0.0
        %1108 = vadd.xlane.f32.xlu0 %v1107
        %v1109 = vpop.xlane.xlu0 %1108
        %v1110 = vmul.f32 %v1109, %v1103
        %v1111 = vadd.f32 %v1110, 1e-05
        %v1112 = vrsqrt.pop %v1111
        %v1113 = vmul.f32 %v1105, %v1112
        %v1115 = vlaneseq
        %v1116 = vshrl.u32 %v1115, 7
        %v1117 = vsub.s32 0, %v1116
        %v1118 = vrot.slane %v1098, %v1117
        %v1120 = vmul.f32 %v1113, %v1118
        %v1122 = vlaneseq
        %v1123 = vshrl.u32 %v1122, 7
        %v1124 = vsub.s32 0, %v1123
        %v1125 = vrot.slane %v1099, %v1124
        %v1127 = vadd.f32 %v1120, %v1125
        %v1128 = vpack.c.bf16 %v1127, %v1127
        %v1129 = vld [vmem:[%s8] sm:$0xf]
        %v1130 = vld [vmem:[%s8 + $0x4] sm:$0xf]
        %v1131 = vld [vmem:[%s8 + $0x8] sm:$0xf]
        %v1132 = vld [vmem:[%s8 + $0xc] sm:$0xf]
        %v1133 = vld [vmem:[%s9] sm:$0x1]
        %v1135 = vlaneseq
        %v1136 = vshrl.u32 %v1135, 7
        %v1137 = vsub.s32 0, %v1136
        %v1138 = vrot.slane %v1133, %v1137
        %v1144 = vunpack.c.l.b16 %v1129
        %v1145 = vunpack.c.l.b16 %v1130
        %v1146 = vunpack.c.l.b16 %v1131
        %v1147 = vunpack.c.l.b16 %v1132
        %v1148 = vpack.c.b16 %v1145, %v1144
        %v1149 = vpack.c.b16 %v1147, %v1146
        %v1153 = vsel %vm517, %v1128, 0
        %1155 = vmatprep.subr.bf16.mxu0 0
        %1156 = vmatpush1.bf16.msra.mxu0 0
        %1157 = vmatprep.subr.bf16.mxu0 0
        %1158 = vmatpush1.bf16.msra.mxu0 0
        %1159 = vmatprep.subr.bf16.mxu0 0
        %1160 = vmatpush1.bf16.msra.mxu0 0
        %1161 = vmatprep.subr.bf16.mxu0 0
        %1162 = vmatpush1.bf16.msra.mxu0 0
        %1163 = vmatprep.subr.bf16.mxu0 0
        %1164 = vmatpush1.bf16.msra.mxu0 0
        %1165 = vmatprep.subr.bf16.mxu0 0
        %1166 = vmatpush1.bf16.msra.mxu0 0
        %1167 = vmatprep.subr.bf16.mxu0 0
        %1168 = vmatpush1.bf16.msra.mxu0 %v1149
        %1169 = vmatprep.subr.bf16.mxu0 0
        %1170 = vmatpush1.bf16.msra.mxu0 %v1148
        %1171 = vmatprep.subr.bf16.mxu0 0
        %1172 = vmatpush2.bf16.msra.mxu0 0
        %1173 = vmatprep.subr.bf16.mxu0 0
        %1174 = vmatpush2.bf16.msra.mxu0 0
        %1175 = vmatprep.subr.bf16.mxu0 0
        %1176 = vmatpush2.bf16.msra.mxu0 0
        %1177 = vmatprep.subr.bf16.mxu0 0
        %1178 = vmatpush2.bf16.msra.mxu0 0
        %1179 = vmatprep.subr.bf16.mxu0 0
        %1180 = vmatpush2.bf16.msra.mxu0 0
        %1181 = vmatprep.subr.bf16.mxu0 0
        %1182 = vmatpush2.bf16.msra.mxu0 0
        %1183 = vmatprep.subr.bf16.mxu0 0
        %1184 = vmatpush2.bf16.msra.mxu0 0
        %1185 = vmatprep.subr.bf16.mxu0 0
        %1186 = vmatpush2.bf16.msra.mxu0 0
        %1187 = vmatprep.mubr.bf16.mxu0 0
        %1188 = vmatmul.mubr.bf16.gmra.mxu0 %v1153
        %v1189 = vpop.f32.mrf.mxu0
        %v1190 = vadd.f32 %v1138, %v1189
        %v1191 = vpop.f32.mrf.mxu0
        %v1192 = vpop.f32.mrf.mxu0
        %v1193 = vpop.f32.mrf.mxu0
        %1194 = vdwg.mxu0
        %v1195 = vmul.f32 %v1190, 0.5
        %v1196 = vmul.f32 %v1190, 0.70710677
        %v1197 = verf.f32.pop %v1196
        %v1198 = vadd.f32 %v1197, 1.0
        %v1199 = vmul.f32 %v1195, %v1198
        %v1200 = vpack.c.bf16 %v1199, %v1199
        %v1201 = vld [vmem:[%s10] sm:$0xf]
        %v1202 = vld [vmem:[%s10 + $0x4] sm:$0xf]
        %v1203 = vld [vmem:[%s10 + $0x8] sm:$0xf]
        %v1204 = vld [vmem:[%s10 + $0xc] sm:$0xf]
        %v1205 = vld [vmem:[%s10 + $0x10] sm:$0xf]
        %v1206 = vld [vmem:[%s10 + $0x14] sm:$0xf]
        %v1207 = vld [vmem:[%s10 + $0x18] sm:$0xf]
        %v1208 = vld [vmem:[%s10 + $0x1c] sm:$0xf]
        %v1209 = vld [vmem:[%s10 + $0x20] sm:$0xf]
        %v1210 = vld [vmem:[%s10 + $0x24] sm:$0xf]
        %v1211 = vld [vmem:[%s10 + $0x28] sm:$0xf]
        %v1212 = vld [vmem:[%s10 + $0x2c] sm:$0xf]
        %v1213 = vld [vmem:[%s10 + $0x30] sm:$0xf]
        %v1214 = vld [vmem:[%s10 + $0x34] sm:$0xf]
        %v1215 = vld [vmem:[%s10 + $0x38] sm:$0xf]
        %v1216 = vld [vmem:[%s10 + $0x3c] sm:$0xf]
        %v1217 = vld [vmem:[%s11] sm:$0x1]
        %v1219 = vlaneseq
        %v1220 = vshrl.u32 %v1219, 7
        %v1221 = vsub.s32 0, %v1220
        %v1222 = vrot.slane %v1217, %v1221
        %v1240 = vunpack.c.l.b16 %v1201
        %v1241 = vunpack.c.l.b16 %v1202
        %v1242 = vunpack.c.l.b16 %v1203
        %v1243 = vunpack.c.l.b16 %v1204
        %v1244 = vunpack.c.l.b16 %v1205
        %v1245 = vunpack.c.l.b16 %v1206
        %v1246 = vunpack.c.l.b16 %v1207
        %v1247 = vunpack.c.l.b16 %v1208
        %v1248 = vunpack.c.l.b16 %v1209
        %v1249 = vunpack.c.l.b16 %v1210
        %v1250 = vunpack.c.l.b16 %v1211
        %v1251 = vunpack.c.l.b16 %v1212
        %v1252 = vunpack.c.l.b16 %v1213
        %v1253 = vunpack.c.l.b16 %v1214
        %v1254 = vunpack.c.l.b16 %v1215
        %v1255 = vunpack.c.l.b16 %v1216
        %v1256 = vpack.c.b16 %v1241, %v1240
        %v1257 = vpack.c.b16 %v1243, %v1242
        %v1258 = vpack.c.b16 %v1245, %v1244
        %v1259 = vpack.c.b16 %v1247, %v1246
        %v1260 = vpack.c.b16 %v1249, %v1248
        %v1261 = vpack.c.b16 %v1251, %v1250
        %v1262 = vpack.c.b16 %v1253, %v1252
        %v1263 = vpack.c.b16 %v1255, %v1254
        %1272 = vmatprep.subr.bf16.mxu0 0
        %1273 = vmatpush1.bf16.msra.mxu0 %v1263
        %1274 = vmatprep.subr.bf16.mxu0 0
        %1275 = vmatpush1.bf16.msra.mxu0 %v1262
        %1276 = vmatprep.subr.bf16.mxu0 0
        %1277 = vmatpush1.bf16.msra.mxu0 %v1261
        %1278 = vmatprep.subr.bf16.mxu0 0
        %1279 = vmatpush1.bf16.msra.mxu0 %v1260
        %1280 = vmatprep.subr.bf16.mxu0 0
        %1281 = vmatpush1.bf16.msra.mxu0 %v1259
        %1282 = vmatprep.subr.bf16.mxu0 0
        %1283 = vmatpush1.bf16.msra.mxu0 %v1258
        %1284 = vmatprep.subr.bf16.mxu0 0
        %1285 = vmatpush1.bf16.msra.mxu0 %v1257
        %1286 = vmatprep.subr.bf16.mxu0 0
        %1287 = vmatpush1.bf16.msra.mxu0 %v1256
        %1288 = vmatprep.subr.bf16.mxu0 0
        %1289 = vmatpush2.bf16.msra.mxu0 0
        %1290 = vmatprep.subr.bf16.mxu0 0
        %1291 = vmatpush2.bf16.msra.mxu0 0
        %1292 = vmatprep.subr.bf16.mxu0 0
        %1293 = vmatpush2.bf16.msra.mxu0 0
        %1294 = vmatprep.subr.bf16.mxu0 0
        %1295 = vmatpush2.bf16.msra.mxu0 0
        %1296 = vmatprep.subr.bf16.mxu0 0
        %1297 = vmatpush2.bf16.msra.mxu0 0
        %1298 = vmatprep.subr.bf16.mxu0 0
        %1299 = vmatpush2.bf16.msra.mxu0 0
        %1300 = vmatprep.subr.bf16.mxu0 0
        %1301 = vmatpush2.bf16.msra.mxu0 0
        %1302 = vmatprep.subr.bf16.mxu0 0
        %1303 = vmatpush2.bf16.msra.mxu0 0
        %1304 = vmatprep.mubr.bf16.mxu0 0
        %1305 = vmatmul.mubr.bf16.gmra.mxu0 %v1200
        %v1306 = vpop.f32.mrf.mxu0
        %v1307 = vadd.f32 %v1222, %v1306
        %v1308 = vpop.f32.mrf.mxu0
        %v1309 = vpop.f32.mrf.mxu0
        %v1310 = vpop.f32.mrf.mxu0
        %1311 = vdwg.mxu0
        %v1312 = vadd.f32 %v1127, %v1307
        %v1313 = vld [vmem:[%s12] sm:$0x1]
        %v1314 = vld [vmem:[%s13] sm:$0x1]
        %v1315 = vsel %vm517, %v1312, 0.0
        %1316 = vadd.xlane.f32.xlu0 %v1315
        %v1317 = vpop.xlane.xlu0 %1316
        %v1318 = vmul.f32 %v1317, %v1103
        %v1319 = vsub.f32 %v1312, %v1318
        %v1320 = vmul.f32 %v1319, %v1319
        %v1321 = vsel %vm517, %v1320, 0.0
        %1322 = vadd.xlane.f32.xlu0 %v1321
        %v1323 = vpop.xlane.xlu0 %1322
        %v1324 = vmul.f32 %v1323, %v1103
        %v1325 = vadd.f32 %v1324, 1e-05
        %v1326 = vrsqrt.pop %v1325
        %v1327 = vmul.f32 %v1319, %v1326
        %v1329 = vlaneseq
        %v1330 = vshrl.u32 %v1329, 7
        %v1331 = vsub.s32 0, %v1330
        %v1332 = vrot.slane %v1313, %v1331
        %v1334 = vmul.f32 %v1327, %v1332
        %v1336 = vlaneseq
        %v1337 = vshrl.u32 %v1336, 7
        %v1338 = vsub.s32 0, %v1337
        %v1339 = vrot.slane %v1314, %v1338
        %v1341 = vadd.f32 %v1334, %v1339
        %v1342 = vpack.c.bf16 %v1341, %v1341
        %s1343 = scalar_lea.vmem %s2, 16
        %v1344 = vld [vmem:[%s1343] sm:$0xf]
        %v1345 = vld [vmem:[%s1343 + $0x4] sm:$0xf]
        %v1346 = vld [vmem:[%s1343 + $0x8] sm:$0xf]
        %v1347 = vld [vmem:[%s1343 + $0xc] sm:$0xf]
        %s1348 = scalar_lea.vmem %s3, 1
        %v1349 = vld [vmem:[%s1348] sm:$0x1]
        %v1351 = vlaneseq
        %v1352 = vshrl.u32 %v1351, 7
        %v1353 = vsub.s32 0, %v1352
        %v1354 = vrot.slane %v1349, %v1353
        %v1360 = vunpack.c.l.b16 %v1344
        %v1361 = vunpack.c.l.b16 %v1345
        %v1362 = vunpack.c.l.b16 %v1346
        %v1363 = vunpack.c.l.b16 %v1347
        %v1364 = vpack.c.b16 %v1361, %v1360
        %v1365 = vpack.c.b16 %v1363, %v1362
        %v1369 = vsel %vm517, %v1342, 0
        %1371 = vmatprep.subr.bf16.mxu0 0
        %1372 = vmatpush1.bf16.msra.mxu0 0
        %1373 = vmatprep.subr.bf16.mxu0 0
        %1374 = vmatpush1.bf16.msra.mxu0 0
        %1375 = vmatprep.subr.bf16.mxu0 0
        %1376 = vmatpush1.bf16.msra.mxu0 0
        %1377 = vmatprep.subr.bf16.mxu0 0
        %1378 = vmatpush1.bf16.msra.mxu0 0
        %1379 = vmatprep.subr.bf16.mxu0 0
        %1380 = vmatpush1.bf16.msra.mxu0 0
        %1381 = vmatprep.subr.bf16.mxu0 0
        %1382 = vmatpush1.bf16.msra.mxu0 0
        %1383 = vmatprep.subr.bf16.mxu0 0
        %1384 = vmatpush1.bf16.msra.mxu0 %v1365
        %1385 = vmatprep.subr.bf16.mxu0 0
        %1386 = vmatpush1.bf16.msra.mxu0 %v1364
        %1387 = vmatprep.subr.bf16.mxu0 0
        %1388 = vmatpush2.bf16.msra.mxu0 0
        %1389 = vmatprep.subr.bf16.mxu0 0
        %1390 = vmatpush2.bf16.msra.mxu0 0
        %1391 = vmatprep.subr.bf16.mxu0 0
        %1392 = vmatpush2.bf16.msra.mxu0 0
        %1393 = vmatprep.subr.bf16.mxu0 0
        %1394 = vmatpush2.bf16.msra.mxu0 0
        %1395 = vmatprep.subr.bf16.mxu0 0
        %1396 = vmatpush2.bf16.msra.mxu0 0
        %1397 = vmatprep.subr.bf16.mxu0 0
        %1398 = vmatpush2.bf16.msra.mxu0 0
        %1399 = vmatprep.subr.bf16.mxu0 0
        %1400 = vmatpush2.bf16.msra.mxu0 0
        %1401 = vmatprep.subr.bf16.mxu0 0
        %1402 = vmatpush2.bf16.msra.mxu0 0
        %1403 = vmatprep.mubr.bf16.mxu0 0
        %1404 = vmatmul.mubr.bf16.gmra.mxu0 %v1369
        %v1405 = vpop.f32.mrf.mxu0
        %v1406 = vadd.f32 %v1354, %v1405
        %v1407 = vpop.f32.mrf.mxu0
        %v1408 = vpop.f32.mrf.mxu0
        %v1409 = vpop.f32.mrf.mxu0
        %1410 = vdwg.mxu0
        %1412 = vrot.lane.b32.xlu0 %v1406, 120
        %v1413 = vpop.permute.xlu0 %1412
        %1415 = vrot.lane.b32.xlu0 %v1406, 112
        %v1416 = vpop.permute.xlu0 %1415
        %1418 = vrot.lane.b32.xlu0 %v1406, 104
        %v1419 = vpop.permute.xlu0 %1418
        %v1421 = vpack.c.bf16 %v1406, %v1406
        %v1422 = vpack.c.bf16 %v1413, %v1413
        %v1423 = vpack.c.bf16 %v1416, %v1416
        %v1424 = vpack.c.bf16 %v1419, %v1419
        %1426 = vrot.lane.b32.xlu0 %v1421, 96
        %v1427 = vpop.permute.xlu0 %1426
        %v1429 = vsel %vm578, %v1421, 0
        %v1432 = vsel %vm578, %v1427, 0
        %1434 = vmatprep.subr.bf16.mxu0 0
        %1435 = vmatpush1.bf16.xpose.msra.mxu0 0
        %1436 = vmatprep.subr.bf16.mxu0 0
        %1437 = vmatpush1.bf16.xpose.msra.mxu0 0
        %1438 = vmatprep.subr.bf16.mxu0 0
        %1439 = vmatpush1.bf16.xpose.msra.mxu0 0
        %1440 = vmatprep.subr.bf16.mxu0 0
        %1441 = vmatpush1.bf16.xpose.msra.mxu0 0
        %1442 = vmatprep.subr.bf16.mxu0 0
        %1443 = vmatpush1.bf16.xpose.msra.mxu0 0
        %1444 = vmatprep.subr.bf16.mxu0 0
        %1445 = vmatpush1.bf16.xpose.msra.mxu0 0
        %1446 = vmatprep.subr.bf16.mxu0 0
        %1447 = vmatpush1.bf16.xpose.msra.mxu0 0
        %1448 = vmatprep.subr.bf16.mxu0 0
        %1449 = vmatpush1.bf16.xpose.msra.mxu0 %v1432
        %1450 = vmatprep.subr.bf16.mxu0 0
        %1451 = vmatpush2.bf16.xpose.msra.mxu0 0
        %1452 = vmatprep.subr.bf16.mxu0 0
        %1453 = vmatpush2.bf16.xpose.msra.mxu0 0
        %1454 = vmatprep.subr.bf16.mxu0 0
        %1455 = vmatpush2.bf16.xpose.msra.mxu0 0
        %1456 = vmatprep.subr.bf16.mxu0 0
        %1457 = vmatpush2.bf16.xpose.msra.mxu0 0
        %1458 = vmatprep.subr.bf16.mxu0 0
        %1459 = vmatpush2.bf16.xpose.msra.mxu0 0
        %1460 = vmatprep.subr.bf16.mxu0 0
        %1461 = vmatpush2.bf16.xpose.msra.mxu0 0
        %1462 = vmatprep.subr.bf16.mxu0 0
        %1463 = vmatpush2.bf16.xpose.msra.mxu0 0
        %1464 = vmatprep.subr.bf16.mxu0 0
        %1465 = vmatpush2.bf16.xpose.msra.mxu0 0
        %1466 = vmatprep.mubr.bf16.mxu0 0
        %1467 = vmatmul.mubr.bf16.gmra.mxu0 %v1429
        %v1468 = vpop.f32.mrf.mxu0
        %v1469 = vadd.f32 %v492, %v1468
        %v1470 = vpop.f32.mrf.mxu0
        %v1471 = vpop.f32.mrf.mxu0
        %v1472 = vpop.f32.mrf.mxu0
        %1473 = vdwg.mxu0
        %1475 = vrot.lane.b32.xlu0 %v1422, 96
        %v1476 = vpop.permute.xlu0 %1475
        %v1478 = vsel %vm578, %v1422, 0
        %v1481 = vsel %vm578, %v1476, 0
        %1483 = vmatprep.subr.bf16.mxu0 0
        %1484 = vmatpush1.bf16.xpose.msra.mxu0 0
        %1485 = vmatprep.subr.bf16.mxu0 0
        %1486 = vmatpush1.bf16.xpose.msra.mxu0 0
        %1487 = vmatprep.subr.bf16.mxu0 0
        %1488 = vmatpush1.bf16.xpose.msra.mxu0 0
        %1489 = vmatprep.subr.bf16.mxu0 0
        %1490 = vmatpush1.bf16.xpose.msra.mxu0 0
        %1491 = vmatprep.subr.bf16.mxu0 0
        %1492 = vmatpush1.bf16.xpose.msra.mxu0 0
        %1493 = vmatprep.subr.bf16.mxu0 0
        %1494 = vmatpush1.bf16.xpose.msra.mxu0 0
        %1495 = vmatprep.subr.bf16.mxu0 0
        %1496 = vmatpush1.bf16.xpose.msra.mxu0 0
        %1497 = vmatprep.subr.bf16.mxu0 0
        %1498 = vmatpush1.bf16.xpose.msra.mxu0 %v1481
        %1499 = vmatprep.subr.bf16.mxu0 0
        %1500 = vmatpush2.bf16.xpose.msra.mxu0 0
        %1501 = vmatprep.subr.bf16.mxu0 0
        %1502 = vmatpush2.bf16.xpose.msra.mxu0 0
        %1503 = vmatprep.subr.bf16.mxu0 0
        %1504 = vmatpush2.bf16.xpose.msra.mxu0 0
        %1505 = vmatprep.subr.bf16.mxu0 0
        %1506 = vmatpush2.bf16.xpose.msra.mxu0 0
        %1507 = vmatprep.subr.bf16.mxu0 0
        %1508 = vmatpush2.bf16.xpose.msra.mxu0 0
        %1509 = vmatprep.subr.bf16.mxu0 0
        %1510 = vmatpush2.bf16.xpose.msra.mxu0 0
        %1511 = vmatprep.subr.bf16.mxu0 0
        %1512 = vmatpush2.bf16.xpose.msra.mxu0 0
        %1513 = vmatprep.subr.bf16.mxu0 0
        %1514 = vmatpush2.bf16.xpose.msra.mxu0 0
        %1515 = vmatprep.mubr.bf16.mxu0 0
        %1516 = vmatmul.mubr.bf16.gmra.mxu0 %v1478
        %v1517 = vpop.f32.mrf.mxu0
        %v1518 = vadd.f32 %v492, %v1517
        %v1519 = vpop.f32.mrf.mxu0
        %v1520 = vpop.f32.mrf.mxu0
        %v1521 = vpop.f32.mrf.mxu0
        %1522 = vdwg.mxu0
        %1524 = vrot.lane.b32.xlu0 %v1423, 96
        %v1525 = vpop.permute.xlu0 %1524
        %v1527 = vsel %vm578, %v1423, 0
        %v1530 = vsel %vm578, %v1525, 0
        %1532 = vmatprep.subr.bf16.mxu0 0
        %1533 = vmatpush1.bf16.xpose.msra.mxu0 0
        %1534 = vmatprep.subr.bf16.mxu0 0
        %1535 = vmatpush1.bf16.xpose.msra.mxu0 0
        %1536 = vmatprep.subr.bf16.mxu0 0
        %1537 = vmatpush1.bf16.xpose.msra.mxu0 0
        %1538 = vmatprep.subr.bf16.mxu0 0
        %1539 = vmatpush1.bf16.xpose.msra.mxu0 0
        %1540 = vmatprep.subr.bf16.mxu0 0
        %1541 = vmatpush1.bf16.xpose.msra.mxu0 0
        %1542 = vmatprep.subr.bf16.mxu0 0
        %1543 = vmatpush1.bf16.xpose.msra.mxu0 0
        %1544 = vmatprep.subr.bf16.mxu0 0
        %1545 = vmatpush1.bf16.xpose.msra.mxu0 0
        %1546 = vmatprep.subr.bf16.mxu0 0
        %1547 = vmatpush1.bf16.xpose.msra.mxu0 %v1530
        %1548 = vmatprep.subr.bf16.mxu0 0
        %1549 = vmatpush2.bf16.xpose.msra.mxu0 0
        %1550 = vmatprep.subr.bf16.mxu0 0
        %1551 = vmatpush2.bf16.xpose.msra.mxu0 0
        %1552 = vmatprep.subr.bf16.mxu0 0
        %1553 = vmatpush2.bf16.xpose.msra.mxu0 0
        %1554 = vmatprep.subr.bf16.mxu0 0
        %1555 = vmatpush2.bf16.xpose.msra.mxu0 0
        %1556 = vmatprep.subr.bf16.mxu0 0
        %1557 = vmatpush2.bf16.xpose.msra.mxu0 0
        %1558 = vmatprep.subr.bf16.mxu0 0
        %1559 = vmatpush2.bf16.xpose.msra.mxu0 0
        %1560 = vmatprep.subr.bf16.mxu0 0
        %1561 = vmatpush2.bf16.xpose.msra.mxu0 0
        %1562 = vmatprep.subr.bf16.mxu0 0
        %1563 = vmatpush2.bf16.xpose.msra.mxu0 0
        %1564 = vmatprep.mubr.bf16.mxu0 0
        %1565 = vmatmul.mubr.bf16.gmra.mxu0 %v1527
        %v1566 = vpop.f32.mrf.mxu0
        %v1567 = vadd.f32 %v492, %v1566
        %v1568 = vpop.f32.mrf.mxu0
        %v1569 = vpop.f32.mrf.mxu0
        %v1570 = vpop.f32.mrf.mxu0
        %1571 = vdwg.mxu0
        %1573 = vrot.lane.b32.xlu0 %v1424, 96
        %v1574 = vpop.permute.xlu0 %1573
        %v1576 = vsel %vm578, %v1424, 0
        %v1579 = vsel %vm578, %v1574, 0
        %1581 = vmatprep.subr.bf16.mxu0 0
        %1582 = vmatpush1.bf16.xpose.msra.mxu0 0
        %1583 = vmatprep.subr.bf16.mxu0 0
        %1584 = vmatpush1.bf16.xpose.msra.mxu0 0
        %1585 = vmatprep.subr.bf16.mxu0 0
        %1586 = vmatpush1.bf16.xpose.msra.mxu0 0
        %1587 = vmatprep.subr.bf16.mxu0 0
        %1588 = vmatpush1.bf16.xpose.msra.mxu0 0
        %1589 = vmatprep.subr.bf16.mxu0 0
        %1590 = vmatpush1.bf16.xpose.msra.mxu0 0
        %1591 = vmatprep.subr.bf16.mxu0 0
        %1592 = vmatpush1.bf16.xpose.msra.mxu0 0
        %1593 = vmatprep.subr.bf16.mxu0 0
        %1594 = vmatpush1.bf16.xpose.msra.mxu0 0
        %1595 = vmatprep.subr.bf16.mxu0 0
        %1596 = vmatpush1.bf16.xpose.msra.mxu0 %v1579
        %1597 = vmatprep.subr.bf16.mxu0 0
        %1598 = vmatpush2.bf16.xpose.msra.mxu0 0
        %1599 = vmatprep.subr.bf16.mxu0 0
        %1600 = vmatpush2.bf16.xpose.msra.mxu0 0
        %1601 = vmatprep.subr.bf16.mxu0 0
        %1602 = vmatpush2.bf16.xpose.msra.mxu0 0
        %1603 = vmatprep.subr.bf16.mxu0 0
        %1604 = vmatpush2.bf16.xpose.msra.mxu0 0
        %1605 = vmatprep.subr.bf16.mxu0 0
        %1606 = vmatpush2.bf16.xpose.msra.mxu0 0
        %1607 = vmatprep.subr.bf16.mxu0 0
        %1608 = vmatpush2.bf16.xpose.msra.mxu0 0
        %1609 = vmatprep.subr.bf16.mxu0 0
        %1610 = vmatpush2.bf16.xpose.msra.mxu0 0
        %1611 = vmatprep.subr.bf16.mxu0 0
        %1612 = vmatpush2.bf16.xpose.msra.mxu0 0
        %1613 = vmatprep.mubr.bf16.mxu0 0
        %1614 = vmatmul.mubr.bf16.gmra.mxu0 %v1576
        %v1615 = vpop.f32.mrf.mxu0
        %v1616 = vadd.f32 %v492, %v1615
        %v1617 = vpop.f32.mrf.mxu0
        %v1618 = vpop.f32.mrf.mxu0
        %v1619 = vpop.f32.mrf.mxu0
        %1620 = vdwg.mxu0
        %v1621 = vsel %vm578, %v1469, -inf
        %1622 = vmax.xlane.f32.xlu0 %v1621
        %v1623 = vpop.xlane.xlu0 %1622
        %v1624 = vsel %vm578, %v1518, -inf
        %1625 = vmax.xlane.f32.xlu0 %v1624
        %v1626 = vpop.xlane.xlu0 %1625
        %v1627 = vsel %vm578, %v1567, -inf
        %1628 = vmax.xlane.f32.xlu0 %v1627
        %v1629 = vpop.xlane.xlu0 %1628
        %v1630 = vsel %vm578, %v1616, -inf
        %1631 = vmax.xlane.f32.xlu0 %v1630
        %v1632 = vpop.xlane.xlu0 %1631
        %v1633 = vsub.f32 %v1469, %v1623
        %v1634 = vsub.f32 %v1518, %v1626
        %v1635 = vsub.f32 %v1567, %v1629
        %v1636 = vsub.f32 %v1616, %v1632
        %v1637 = vmul.f32 %v1633, 1.442695
        %v1638 = vpow.pop %v1637
        %v1639 = vmul.f32 %v1634, 1.442695
        %v1640 = vpow.pop %v1639
        %v1641 = vmul.f32 %v1635, 1.442695
        %v1642 = vpow.pop %v1641
        %v1643 = vmul.f32 %v1636, 1.442695
        %v1644 = vpow.pop %v1643
        %v1645 = vsel %vm578, %v1638, 0.0
        %1646 = vadd.xlane.f32.xlu0 %v1645
        %v1647 = vpop.xlane.xlu0 %1646
        %v1648 = vsel %vm578, %v1640, 0.0
        %1649 = vadd.xlane.f32.xlu0 %v1648
        %v1650 = vpop.xlane.xlu0 %1649
        %v1651 = vsel %vm578, %v1642, 0.0
        %1652 = vadd.xlane.f32.xlu0 %v1651
        %v1653 = vpop.xlane.xlu0 %1652
        %v1654 = vsel %vm578, %v1644, 0.0
        %1655 = vadd.xlane.f32.xlu0 %v1654
        %v1656 = vpop.xlane.xlu0 %1655
        %v1657 = vrcp.pop %v1647
        %v1658 = vrcp.pop %v1650
        %v1659 = vrcp.pop %v1653
        %v1660 = vrcp.pop %v1656
        %v1661 = vmul.f32 %v1638, %v1657
        %v1662 = vmul.f32 %v1640, %v1658
        %v1663 = vmul.f32 %v1642, %v1659
        %v1664 = vmul.f32 %v1644, %v1660
        %v1665 = vpack.c.bf16 %v1661, %v1661
        %v1666 = vpack.c.bf16 %v1662, %v1662
        %v1667 = vpack.c.bf16 %v1663, %v1663
        %v1668 = vpack.c.bf16 %v1664, %v1664
        %1669 = vrot.lane.b32.xlu0 %v1421, 64
        %v1670 = vpop.permute.xlu0 %1669
        %v1672 = vsel %vm578, %v1665, 0
        %v1675 = vsel %vm825, %v1670, 0
        %1677 = vmatprep.subr.bf16.mxu0 0
        %1678 = vmatpush1.bf16.msra.mxu0 0
        %1679 = vmatprep.subr.bf16.mxu0 0
        %1680 = vmatpush1.bf16.msra.mxu0 0
        %1681 = vmatprep.subr.bf16.mxu0 0
        %1682 = vmatpush1.bf16.msra.mxu0 0
        %1683 = vmatprep.subr.bf16.mxu0 0
        %1684 = vmatpush1.bf16.msra.mxu0 0
        %1685 = vmatprep.subr.bf16.mxu0 0
        %1686 = vmatpush1.bf16.msra.mxu0 0
        %1687 = vmatprep.subr.bf16.mxu0 0
        %1688 = vmatpush1.bf16.msra.mxu0 0
        %1689 = vmatprep.subr.bf16.mxu0 0
        %1690 = vmatpush1.bf16.msra.mxu0 0
        %1691 = vmatprep.subr.bf16.mxu0 0
        %1692 = vmatpush1.bf16.msra.mxu0 %v1675
        %1693 = vmatprep.subr.bf16.mxu0 0
        %1694 = vmatpush2.bf16.msra.mxu0 0
        %1695 = vmatprep.subr.bf16.mxu0 0
        %1696 = vmatpush2.bf16.msra.mxu0 0
        %1697 = vmatprep.subr.bf16.mxu0 0
        %1698 = vmatpush2.bf16.msra.mxu0 0
        %1699 = vmatprep.subr.bf16.mxu0 0
        %1700 = vmatpush2.bf16.msra.mxu0 0
        %1701 = vmatprep.subr.bf16.mxu0 0
        %1702 = vmatpush2.bf16.msra.mxu0 0
        %1703 = vmatprep.subr.bf16.mxu0 0
        %1704 = vmatpush2.bf16.msra.mxu0 0
        %1705 = vmatprep.subr.bf16.mxu0 0
        %1706 = vmatpush2.bf16.msra.mxu0 0
        %1707 = vmatprep.subr.bf16.mxu0 0
        %1708 = vmatpush2.bf16.msra.mxu0 0
        %1709 = vmatprep.mubr.bf16.mxu0 0
        %1710 = vmatmul.mubr.bf16.gmra.mxu0 %v1672
        %v1711 = vpop.f32.mrf.mxu0
        %v1712 = vadd.f32 0.0, %v1711
        %v1713 = vpop.f32.mrf.mxu0
        %v1714 = vpop.f32.mrf.mxu0
        %v1715 = vpop.f32.mrf.mxu0
        %1716 = vdwg.mxu0
        %1717 = vrot.lane.b32.xlu0 %v1422, 64
        %v1718 = vpop.permute.xlu0 %1717
        %v1720 = vsel %vm578, %v1666, 0
        %v1723 = vsel %vm825, %v1718, 0
        %1725 = vmatprep.subr.bf16.mxu0 0
        %1726 = vmatpush1.bf16.msra.mxu0 0
        %1727 = vmatprep.subr.bf16.mxu0 0
        %1728 = vmatpush1.bf16.msra.mxu0 0
        %1729 = vmatprep.subr.bf16.mxu0 0
        %1730 = vmatpush1.bf16.msra.mxu0 0
        %1731 = vmatprep.subr.bf16.mxu0 0
        %1732 = vmatpush1.bf16.msra.mxu0 0
        %1733 = vmatprep.subr.bf16.mxu0 0
        %1734 = vmatpush1.bf16.msra.mxu0 0
        %1735 = vmatprep.subr.bf16.mxu0 0
        %1736 = vmatpush1.bf16.msra.mxu0 0
        %1737 = vmatprep.subr.bf16.mxu0 0
        %1738 = vmatpush1.bf16.msra.mxu0 0
        %1739 = vmatprep.subr.bf16.mxu0 0
        %1740 = vmatpush1.bf16.msra.mxu0 %v1723
        %1741 = vmatprep.subr.bf16.mxu0 0
        %1742 = vmatpush2.bf16.msra.mxu0 0
        %1743 = vmatprep.subr.bf16.mxu0 0
        %1744 = vmatpush2.bf16.msra.mxu0 0
        %1745 = vmatprep.subr.bf16.mxu0 0
        %1746 = vmatpush2.bf16.msra.mxu0 0
        %1747 = vmatprep.subr.bf16.mxu0 0
        %1748 = vmatpush2.bf16.msra.mxu0 0
        %1749 = vmatprep.subr.bf16.mxu0 0
        %1750 = vmatpush2.bf16.msra.mxu0 0
        %1751 = vmatprep.subr.bf16.mxu0 0
        %1752 = vmatpush2.bf16.msra.mxu0 0
        %1753 = vmatprep.subr.bf16.mxu0 0
        %1754 = vmatpush2.bf16.msra.mxu0 0
        %1755 = vmatprep.subr.bf16.mxu0 0
        %1756 = vmatpush2.bf16.msra.mxu0 0
        %1757 = vmatprep.mubr.bf16.mxu0 0
        %1758 = vmatmul.mubr.bf16.gmra.mxu0 %v1720
        %v1759 = vpop.f32.mrf.mxu0
        %v1760 = vadd.f32 0.0, %v1759
        %v1761 = vpop.f32.mrf.mxu0
        %v1762 = vpop.f32.mrf.mxu0
        %v1763 = vpop.f32.mrf.mxu0
        %1764 = vdwg.mxu0
        %1765 = vrot.lane.b32.xlu0 %v1423, 64
        %v1766 = vpop.permute.xlu0 %1765
        %v1768 = vsel %vm578, %v1667, 0
        %v1771 = vsel %vm825, %v1766, 0
        %1773 = vmatprep.subr.bf16.mxu0 0
        %1774 = vmatpush1.bf16.msra.mxu0 0
        %1775 = vmatprep.subr.bf16.mxu0 0
        %1776 = vmatpush1.bf16.msra.mxu0 0
        %1777 = vmatprep.subr.bf16.mxu0 0
        %1778 = vmatpush1.bf16.msra.mxu0 0
        %1779 = vmatprep.subr.bf16.mxu0 0
        %1780 = vmatpush1.bf16.msra.mxu0 0
        %1781 = vmatprep.subr.bf16.mxu0 0
        %1782 = vmatpush1.bf16.msra.mxu0 0
        %1783 = vmatprep.subr.bf16.mxu0 0
        %1784 = vmatpush1.bf16.msra.mxu0 0
        %1785 = vmatprep.subr.bf16.mxu0 0
        %1786 = vmatpush1.bf16.msra.mxu0 0
        %1787 = vmatprep.subr.bf16.mxu0 0
        %1788 = vmatpush1.bf16.msra.mxu0 %v1771
        %1789 = vmatprep.subr.bf16.mxu0 0
        %1790 = vmatpush2.bf16.msra.mxu0 0
        %1791 = vmatprep.subr.bf16.mxu0 0
        %1792 = vmatpush2.bf16.msra.mxu0 0
        %1793 = vmatprep.subr.bf16.mxu0 0
        %1794 = vmatpush2.bf16.msra.mxu0 0
        %1795 = vmatprep.subr.bf16.mxu0 0
        %1796 = vmatpush2.bf16.msra.mxu0 0
        %1797 = vmatprep.subr.bf16.mxu0 0
        %1798 = vmatpush2.bf16.msra.mxu0 0
        %1799 = vmatprep.subr.bf16.mxu0 0
        %1800 = vmatpush2.bf16.msra.mxu0 0
        %1801 = vmatprep.subr.bf16.mxu0 0
        %1802 = vmatpush2.bf16.msra.mxu0 0
        %1803 = vmatprep.subr.bf16.mxu0 0
        %1804 = vmatpush2.bf16.msra.mxu0 0
        %1805 = vmatprep.mubr.bf16.mxu0 0
        %1806 = vmatmul.mubr.bf16.gmra.mxu0 %v1768
        %v1807 = vpop.f32.mrf.mxu0
        %v1808 = vadd.f32 0.0, %v1807
        %v1809 = vpop.f32.mrf.mxu0
        %v1810 = vpop.f32.mrf.mxu0
        %v1811 = vpop.f32.mrf.mxu0
        %1812 = vdwg.mxu0
        %1813 = vrot.lane.b32.xlu0 %v1424, 64
        %v1814 = vpop.permute.xlu0 %1813
        %v1816 = vsel %vm578, %v1668, 0
        %v1819 = vsel %vm825, %v1814, 0
        %1821 = vmatprep.subr.bf16.mxu0 0
        %1822 = vmatpush1.bf16.msra.mxu0 0
        %1823 = vmatprep.subr.bf16.mxu0 0
        %1824 = vmatpush1.bf16.msra.mxu0 0
        %1825 = vmatprep.subr.bf16.mxu0 0
        %1826 = vmatpush1.bf16.msra.mxu0 0
        %1827 = vmatprep.subr.bf16.mxu0 0
        %1828 = vmatpush1.bf16.msra.mxu0 0
        %1829 = vmatprep.subr.bf16.mxu0 0
        %1830 = vmatpush1.bf16.msra.mxu0 0
        %1831 = vmatprep.subr.bf16.mxu0 0
        %1832 = vmatpush1.bf16.msra.mxu0 0
        %1833 = vmatprep.subr.bf16.mxu0 0
        %1834 = vmatpush1.bf16.msra.mxu0 0
        %1835 = vmatprep.subr.bf16.mxu0 0
        %1836 = vmatpush1.bf16.msra.mxu0 %v1819
        %1837 = vmatprep.subr.bf16.mxu0 0
        %1838 = vmatpush2.bf16.msra.mxu0 0
        %1839 = vmatprep.subr.bf16.mxu0 0
        %1840 = vmatpush2.bf16.msra.mxu0 0
        %1841 = vmatprep.subr.bf16.mxu0 0
        %1842 = vmatpush2.bf16.msra.mxu0 0
        %1843 = vmatprep.subr.bf16.mxu0 0
        %1844 = vmatpush2.bf16.msra.mxu0 0
        %1845 = vmatprep.subr.bf16.mxu0 0
        %1846 = vmatpush2.bf16.msra.mxu0 0
        %1847 = vmatprep.subr.bf16.mxu0 0
        %1848 = vmatpush2.bf16.msra.mxu0 0
        %1849 = vmatprep.subr.bf16.mxu0 0
        %1850 = vmatpush2.bf16.msra.mxu0 0
        %1851 = vmatprep.subr.bf16.mxu0 0
        %1852 = vmatpush2.bf16.msra.mxu0 0
        %1853 = vmatprep.mubr.bf16.mxu0 0
        %1854 = vmatmul.mubr.bf16.gmra.mxu0 %v1816
        %v1855 = vpop.f32.mrf.mxu0
        %v1856 = vadd.f32 0.0, %v1855
        %v1857 = vpop.f32.mrf.mxu0
        %v1858 = vpop.f32.mrf.mxu0
        %v1859 = vpop.f32.mrf.mxu0
        %1860 = vdwg.mxu0
        %1862 = vrot.lane.b32.xlu0 %v1760, 8
        %v1863 = vpop.permute.xlu0 %1862
        %1866 = vrot.lane.b32.xlu0 %v1808, 16
        %v1867 = vpop.permute.xlu0 %1866
        %1870 = vrot.lane.b32.xlu0 %v1856, 24
        %v1871 = vpop.permute.xlu0 %1870
        %v1873 = vsel %vm578, %v1712, %v1863
        %v1874 = vsel %vm1026, %v1873, %v1867
        %v1875 = vsel %vm1028, %v1874, %v1871
        %v1876 = vpack.c.bf16 %v1875, %v1875
        %s1877 = scalar_lea.vmem %s4, 16
        %v1878 = vld [vmem:[%s1877] sm:$0xf]
        %v1879 = vld [vmem:[%s1877 + $0x4] sm:$0xf]
        %v1880 = vld [vmem:[%s1877 + $0x8] sm:$0xf]
        %v1881 = vld [vmem:[%s1877 + $0xc] sm:$0xf]
        %s1882 = scalar_lea.vmem %s5, 1
        %v1883 = vld [vmem:[%s1882] sm:$0x1]
        %v1885 = vlaneseq
        %v1886 = vshrl.u32 %v1885, 7
        %v1887 = vsub.s32 0, %v1886
        %v1888 = vrot.slane %v1883, %v1887
        %v1894 = vunpack.c.l.b16 %v1878
        %v1895 = vunpack.c.l.b16 %v1879
        %v1896 = vunpack.c.l.b16 %v1880
        %v1897 = vunpack.c.l.b16 %v1881
        %v1898 = vpack.c.b16 %v1895, %v1894
        %v1899 = vpack.c.b16 %v1897, %v1896
        %v1903 = vsel %vm517, %v1876, 0
        %1905 = vmatprep.subr.bf16.mxu0 0
        %1906 = vmatpush1.bf16.msra.mxu0 0
        %1907 = vmatprep.subr.bf16.mxu0 0
        %1908 = vmatpush1.bf16.msra.mxu0 0
        %1909 = vmatprep.subr.bf16.mxu0 0
        %1910 = vmatpush1.bf16.msra.mxu0 0
        %1911 = vmatprep.subr.bf16.mxu0 0
        %1912 = vmatpush1.bf16.msra.mxu0 0
        %1913 = vmatprep.subr.bf16.mxu0 0
        %1914 = vmatpush1.bf16.msra.mxu0 0
        %1915 = vmatprep.subr.bf16.mxu0 0
        %1916 = vmatpush1.bf16.msra.mxu0 0
        %1917 = vmatprep.subr.bf16.mxu0 0
        %1918 = vmatpush1.bf16.msra.mxu0 %v1899
        %1919 = vmatprep.subr.bf16.mxu0 0
        %1920 = vmatpush1.bf16.msra.mxu0 %v1898
        %1921 = vmatprep.subr.bf16.mxu0 0
        %1922 = vmatpush2.bf16.msra.mxu0 0
        %1923 = vmatprep.subr.bf16.mxu0 0
        %1924 = vmatpush2.bf16.msra.mxu0 0
        %1925 = vmatprep.subr.bf16.mxu0 0
        %1926 = vmatpush2.bf16.msra.mxu0 0
        %1927 = vmatprep.subr.bf16.mxu0 0
        %1928 = vmatpush2.bf16.msra.mxu0 0
        %1929 = vmatprep.subr.bf16.mxu0 0
        %1930 = vmatpush2.bf16.msra.mxu0 0
        %1931 = vmatprep.subr.bf16.mxu0 0
        %1932 = vmatpush2.bf16.msra.mxu0 0
        %1933 = vmatprep.subr.bf16.mxu0 0
        %1934 = vmatpush2.bf16.msra.mxu0 0
        %1935 = vmatprep.subr.bf16.mxu0 0
        %1936 = vmatpush2.bf16.msra.mxu0 0
        %1937 = vmatprep.mubr.bf16.mxu0 0
        %1938 = vmatmul.mubr.bf16.gmra.mxu0 %v1903
        %v1939 = vpop.f32.mrf.mxu0
        %v1940 = vadd.f32 %v1888, %v1939
        %v1941 = vpop.f32.mrf.mxu0
        %v1942 = vpop.f32.mrf.mxu0
        %v1943 = vpop.f32.mrf.mxu0
        %1944 = vdwg.mxu0
        %v1945 = vadd.f32 %v1341, %v1940
        %s1946 = scalar_lea.vmem %s6, 1
        %v1947 = vld [vmem:[%s1946] sm:$0x1]
        %s1948 = scalar_lea.vmem %s7, 1
        %v1949 = vld [vmem:[%s1948] sm:$0x1]
        %v1950 = vsel %vm517, %v1945, 0.0
        %1951 = vadd.xlane.f32.xlu0 %v1950
        %v1952 = vpop.xlane.xlu0 %1951
        %v1953 = vmul.f32 %v1952, %v1103
        %v1954 = vsub.f32 %v1945, %v1953
        %v1955 = vmul.f32 %v1954, %v1954
        %v1956 = vsel %vm517, %v1955, 0.0
        %1957 = vadd.xlane.f32.xlu0 %v1956
        %v1958 = vpop.xlane.xlu0 %1957
        %v1959 = vmul.f32 %v1958, %v1103
        %v1960 = vadd.f32 %v1959, 1e-05
        %v1961 = vrsqrt.pop %v1960
        %v1962 = vmul.f32 %v1954, %v1961
        %v1964 = vlaneseq
        %v1965 = vshrl.u32 %v1964, 7
        %v1966 = vsub.s32 0, %v1965
        %v1967 = vrot.slane %v1947, %v1966
        %v1969 = vmul.f32 %v1962, %v1967
        %v1971 = vlaneseq
        %v1972 = vshrl.u32 %v1971, 7
        %v1973 = vsub.s32 0, %v1972
        %v1974 = vrot.slane %v1949, %v1973
        %v1976 = vadd.f32 %v1969, %v1974
        %v1977 = vpack.c.bf16 %v1976, %v1976
        %s1978 = scalar_lea.vmem %s8, 16
        %v1979 = vld [vmem:[%s1978] sm:$0xf]
        %v1980 = vld [vmem:[%s1978 + $0x4] sm:$0xf]
        %v1981 = vld [vmem:[%s1978 + $0x8] sm:$0xf]
        %v1982 = vld [vmem:[%s1978 + $0xc] sm:$0xf]
        %s1983 = scalar_lea.vmem %s9, 1
        %v1984 = vld [vmem:[%s1983] sm:$0x1]
        %v1986 = vlaneseq
        %v1987 = vshrl.u32 %v1986, 7
        %v1988 = vsub.s32 0, %v1987
        %v1989 = vrot.slane %v1984, %v1988
        %v1995 = vunpack.c.l.b16 %v1979
        %v1996 = vunpack.c.l.b16 %v1980
        %v1997 = vunpack.c.l.b16 %v1981
        %v1998 = vunpack.c.l.b16 %v1982
        %v1999 = vpack.c.b16 %v1996, %v1995
        %v2000 = vpack.c.b16 %v1998, %v1997
        %v2004 = vsel %vm517, %v1977, 0
        %2006 = vmatprep.subr.bf16.mxu0 0
        %2007 = vmatpush1.bf16.msra.mxu0 0
        %2008 = vmatprep.subr.bf16.mxu0 0
        %2009 = vmatpush1.bf16.msra.mxu0 0
        %2010 = vmatprep.subr.bf16.mxu0 0
        %2011 = vmatpush1.bf16.msra.mxu0 0
        %2012 = vmatprep.subr.bf16.mxu0 0
        %2013 = vmatpush1.bf16.msra.mxu0 0
        %2014 = vmatprep.subr.bf16.mxu0 0
        %2015 = vmatpush1.bf16.msra.mxu0 0
        %2016 = vmatprep.subr.bf16.mxu0 0
        %2017 = vmatpush1.bf16.msra.mxu0 0
        %2018 = vmatprep.subr.bf16.mxu0 0
        %2019 = vmatpush1.bf16.msra.mxu0 %v2000
        %2020 = vmatprep.subr.bf16.mxu0 0
        %2021 = vmatpush1.bf16.msra.mxu0 %v1999
        %2022 = vmatprep.subr.bf16.mxu0 0
        %2023 = vmatpush2.bf16.msra.mxu0 0
        %2024 = vmatprep.subr.bf16.mxu0 0
        %2025 = vmatpush2.bf16.msra.mxu0 0
        %2026 = vmatprep.subr.bf16.mxu0 0
        %2027 = vmatpush2.bf16.msra.mxu0 0
        %2028 = vmatprep.subr.bf16.mxu0 0
        %2029 = vmatpush2.bf16.msra.mxu0 0
        %2030 = vmatprep.subr.bf16.mxu0 0
        %2031 = vmatpush2.bf16.msra.mxu0 0
        %2032 = vmatprep.subr.bf16.mxu0 0
        %2033 = vmatpush2.bf16.msra.mxu0 0
        %2034 = vmatprep.subr.bf16.mxu0 0
        %2035 = vmatpush2.bf16.msra.mxu0 0
        %2036 = vmatprep.subr.bf16.mxu0 0
        %2037 = vmatpush2.bf16.msra.mxu0 0
        %2038 = vmatprep.mubr.bf16.mxu0 0
        %2039 = vmatmul.mubr.bf16.gmra.mxu0 %v2004
        %v2040 = vpop.f32.mrf.mxu0
        %v2041 = vadd.f32 %v1989, %v2040
        %v2042 = vpop.f32.mrf.mxu0
        %v2043 = vpop.f32.mrf.mxu0
        %v2044 = vpop.f32.mrf.mxu0
        %2045 = vdwg.mxu0
        %v2046 = vmul.f32 %v2041, 0.5
        %v2047 = vmul.f32 %v2041, 0.70710677
        %v2048 = verf.f32.pop %v2047
        %v2049 = vadd.f32 %v2048, 1.0
        %v2050 = vmul.f32 %v2046, %v2049
        %v2051 = vpack.c.bf16 %v2050, %v2050
        %s2052 = scalar_lea.vmem %s10, 64
        %v2053 = vld [vmem:[%s2052] sm:$0xf]
        %v2054 = vld [vmem:[%s2052 + $0x4] sm:$0xf]
        %v2055 = vld [vmem:[%s2052 + $0x8] sm:$0xf]
        %v2056 = vld [vmem:[%s2052 + $0xc] sm:$0xf]
        %v2057 = vld [vmem:[%s2052 + $0x10] sm:$0xf]
        %v2058 = vld [vmem:[%s2052 + $0x14] sm:$0xf]
        %v2059 = vld [vmem:[%s2052 + $0x18] sm:$0xf]
        %v2060 = vld [vmem:[%s2052 + $0x1c] sm:$0xf]
        %v2061 = vld [vmem:[%s2052 + $0x20] sm:$0xf]
        %v2062 = vld [vmem:[%s2052 + $0x24] sm:$0xf]
        %v2063 = vld [vmem:[%s2052 + $0x28] sm:$0xf]
        %v2064 = vld [vmem:[%s2052 + $0x2c] sm:$0xf]
        %v2065 = vld [vmem:[%s2052 + $0x30] sm:$0xf]
        %v2066 = vld [vmem:[%s2052 + $0x34] sm:$0xf]
        %v2067 = vld [vmem:[%s2052 + $0x38] sm:$0xf]
        %v2068 = vld [vmem:[%s2052 + $0x3c] sm:$0xf]
        %s2069 = scalar_lea.vmem %s11, 1
        %v2070 = vld [vmem:[%s2069] sm:$0x1]
        %v2072 = vlaneseq
        %v2073 = vshrl.u32 %v2072, 7
        %v2074 = vsub.s32 0, %v2073
        %v2075 = vrot.slane %v2070, %v2074
        %v2093 = vunpack.c.l.b16 %v2053
        %v2094 = vunpack.c.l.b16 %v2054
        %v2095 = vunpack.c.l.b16 %v2055
        %v2096 = vunpack.c.l.b16 %v2056
        %v2097 = vunpack.c.l.b16 %v2057
        %v2098 = vunpack.c.l.b16 %v2058
        %v2099 = vunpack.c.l.b16 %v2059
        %v2100 = vunpack.c.l.b16 %v2060
        %v2101 = vunpack.c.l.b16 %v2061
        %v2102 = vunpack.c.l.b16 %v2062
        %v2103 = vunpack.c.l.b16 %v2063
        %v2104 = vunpack.c.l.b16 %v2064
        %v2105 = vunpack.c.l.b16 %v2065
        %v2106 = vunpack.c.l.b16 %v2066
        %v2107 = vunpack.c.l.b16 %v2067
        %v2108 = vunpack.c.l.b16 %v2068
        %v2109 = vpack.c.b16 %v2094, %v2093
        %v2110 = vpack.c.b16 %v2096, %v2095
        %v2111 = vpack.c.b16 %v2098, %v2097
        %v2112 = vpack.c.b16 %v2100, %v2099
        %v2113 = vpack.c.b16 %v2102, %v2101
        %v2114 = vpack.c.b16 %v2104, %v2103
        %v2115 = vpack.c.b16 %v2106, %v2105
        %v2116 = vpack.c.b16 %v2108, %v2107
        %2125 = vmatprep.subr.bf16.mxu0 0
        %2126 = vmatpush1.bf16.msra.mxu0 %v2116
        %2127 = vmatprep.subr.bf16.mxu0 0
        %2128 = vmatpush1.bf16.msra.mxu0 %v2115
        %2129 = vmatprep.subr.bf16.mxu0 0
        %2130 = vmatpush1.bf16.msra.mxu0 %v2114
        %2131 = vmatprep.subr.bf16.mxu0 0
        %2132 = vmatpush1.bf16.msra.mxu0 %v2113
        %2133 = vmatprep.subr.bf16.mxu0 0
        %2134 = vmatpush1.bf16.msra.mxu0 %v2112
        %2135 = vmatprep.subr.bf16.mxu0 0
        %2136 = vmatpush1.bf16.msra.mxu0 %v2111
        %2137 = vmatprep.subr.bf16.mxu0 0
        %2138 = vmatpush1.bf16.msra.mxu0 %v2110
        %2139 = vmatprep.subr.bf16.mxu0 0
        %2140 = vmatpush1.bf16.msra.mxu0 %v2109
        %2141 = vmatprep.subr.bf16.mxu0 0
        %2142 = vmatpush2.bf16.msra.mxu0 0
        %2143 = vmatprep.subr.bf16.mxu0 0
        %2144 = vmatpush2.bf16.msra.mxu0 0
        %2145 = vmatprep.subr.bf16.mxu0 0
        %2146 = vmatpush2.bf16.msra.mxu0 0
        %2147 = vmatprep.subr.bf16.mxu0 0
        %2148 = vmatpush2.bf16.msra.mxu0 0
        %2149 = vmatprep.subr.bf16.mxu0 0
        %2150 = vmatpush2.bf16.msra.mxu0 0
        %2151 = vmatprep.subr.bf16.mxu0 0
        %2152 = vmatpush2.bf16.msra.mxu0 0
        %2153 = vmatprep.subr.bf16.mxu0 0
        %2154 = vmatpush2.bf16.msra.mxu0 0
        %2155 = vmatprep.subr.bf16.mxu0 0
        %2156 = vmatpush2.bf16.msra.mxu0 0
        %2157 = vmatprep.mubr.bf16.mxu0 0
        %2158 = vmatmul.mubr.bf16.gmra.mxu0 %v2051
        %v2159 = vpop.f32.mrf.mxu0
        %v2160 = vadd.f32 %v2075, %v2159
        %v2161 = vpop.f32.mrf.mxu0
        %v2162 = vpop.f32.mrf.mxu0
        %v2163 = vpop.f32.mrf.mxu0
        %2164 = vdwg.mxu0
        %v2165 = vadd.f32 %v1976, %v2160
        %s2166 = scalar_lea.vmem %s12, 1
        %v2167 = vld [vmem:[%s2166] sm:$0x1]
        %s2168 = scalar_lea.vmem %s13, 1
        %v2169 = vld [vmem:[%s2168] sm:$0x1]
        %v2170 = vsel %vm517, %v2165, 0.0
        %2171 = vadd.xlane.f32.xlu0 %v2170
        %v2172 = vpop.xlane.xlu0 %2171
        %v2173 = vmul.f32 %v2172, %v1103
        %v2174 = vsub.f32 %v2165, %v2173
        %v2175 = vmul.f32 %v2174, %v2174
        %v2176 = vsel %vm517, %v2175, 0.0
        %2177 = vadd.xlane.f32.xlu0 %v2176
        %v2178 = vpop.xlane.xlu0 %2177
        %v2179 = vmul.f32 %v2178, %v1103
        %v2180 = vadd.f32 %v2179, 1e-05
        %v2181 = vrsqrt.pop %v2180
        %v2182 = vmul.f32 %v2174, %v2181
        %v2184 = vlaneseq
        %v2185 = vshrl.u32 %v2184, 7
        %v2186 = vsub.s32 0, %v2185
        %v2187 = vrot.slane %v2167, %v2186
        %v2189 = vmul.f32 %v2182, %v2187
        %v2191 = vlaneseq
        %v2192 = vshrl.u32 %v2191, 7
        %v2193 = vsub.s32 0, %v2192
        %v2194 = vrot.slane %v2169, %v2193
        %v2196 = vadd.f32 %v2189, %v2194
        %2197 = vst.msk [vmem:[%s469] sm:$0xff] %vm517, %v2196
        %s2198 = sand.u32 %s340, 1
        %s2199 = scalar_lea.sflag [#allocation3], %s2198
        %s2200 = sand.u32 %s340, 1
        %s2201 = smul.addr %s2200, 8
        %s2202 = scalar_lea.vmem [#allocation2], %s2201
        // Predicated region
        $region77: #{decoder_only_forward.1} parent=75 // pred_check
          %p2203 = pneg %p350
        $region78: #{decoder_only_forward.1} parent=75 // pred_check_branch
          %2205 = sbr.rel (%p2203) target = $region80
        $region79: #{decoder_only_forward.1} parent=75 // pred_region
          %s2207 = ssub.s32 128, 128
          %2208 = vsyncadd %s2199, %s2207
          %s2209 = smul.addr %s28, 128
          %s2210 = scalar_lea.hbm %s14, %s2209
          %s2212 = sshll.u32 %s2202, 4
          %s2213 = int_to_ptr.vmem [resolvable:$true] %s2212
          %2215 = dma.vmem_to_hbm [thread:$0]  %s2213, 128, %s2210, %s2199
        $region80: #{decoder_only_forward.1} parent=75 // pred_fallthru
          _
      $region76: #{decoder_only_forward.1} parent=5 // pred_fallthru
        _
      %p2216 = scmp.le.s32.totalorder 2, %s23
      // Predicated region
      $region81: #{decoder_only_forward.1} parent=5 // pred_check
        %p2217 = pneg %p2216
      $region82: #{decoder_only_forward.1} parent=5 // pred_check_branch
        %2219 = sbr.rel (%p2217) target = $region84
      $region83: #{decoder_only_forward.1} parent=5 // pred_region
        %s2220 = ssub.s32 %s23, 2
        // Predicated region
        $region85: #{decoder_only_forward.1} parent=83 // pred_check
          %p2221 = pneg %p356
        $region86: #{decoder_only_forward.1} parent=83 // pred_check_branch
          %2223 = sbr.rel (%p2221) target = $region88
        $region87: #{decoder_only_forward.1} parent=83 // pred_region
          %s2224 = sand.u32 %s341, 1
          %s2225 = scalar_lea.sflag [#allocation3], %s2224
          %s2226 = sand.u32 %s341, 1
          %s2227 = smul.addr %s2226, 8
          %s2228 = scalar_lea.vmem [#allocation2], %s2227
          %2229 = dma.done %s2225, 128
        $region88: #{decoder_only_forward.1} parent=83 // pred_fallthru
          _
      $region84: #{decoder_only_forward.1} parent=5 // pred_fallthru
        _
    $region6: #{decoder_only_forward.1} parent=1 // loop_footer
      %s27 = sadd.s32 1, %s23
    $region7: #{decoder_only_forward.1} parent=1 // loop_footer_branch
      %22 = sbr.rel target = $region3
    $region8: #{decoder_only_forward.1} parent=1 // loop_exit
      _
    %2230 = vsyncpa [#allocation3], 1
    %s2231 = scalar_lea.sflag [#allocation3], 1
    %2232 = vsyncpa %s2231, 1

</llo_original>
